<compile_context>
chip_gen: v7x
topology: tpu7x:2x2x1
jax: 0.10.0
libtpu: 0.0.40
codegen_flags: <defaults>
</compile_context>

<pallas_src>
import functools

import jax
import jax.numpy as jnp
from jax.experimental import pallas as pl
from jax.experimental.pallas import tpu as pltpu

EPS = 1e-5  # torch.nn.InstanceNorm2d default eps (affine=False)


def _round_up(v, m):
    return -(-int(v) // m) * m


def _tile_bytes(rows, cols, itemsize=4):
    # f32 VMEM footprint of a 2-D tile after (8, 128) padding.
    return itemsize * _round_up(max(int(rows), 1), 8) * _round_up(max(int(cols), 1), 128)


@functools.partial(jax.jit, static_argnames=("use_bf16_matmul",))
def resnet_block_forward(x_nchw, w1, b1, w2, b2, use_bf16_matmul=False):
    """x_nchw: (N, C, H, W) f32.  w*: (Cout, Cin, 3, 3) f32 (PyTorch OIHW).
    b*: (C,) f32.  Returns (N, C, H, W) f32."""
    n, c, h, w = x_nchw.shape
    hw = h * w
    # row-extended scratch: 1 junk lane + (H+2) rows of W + 1 junk lane
    lrx = _round_up(hw + 2 * w + 2, 128)
    inv_hw = 1.0 / float(hw)
    mm_dtype = jnp.bfloat16 if use_bf16_matmul else jnp.float32

    # ---- free reshapes / tiny weight prep (no image-sized XLA work) --------
    x_flat = x_nchw.reshape(n, c, hw).astype(jnp.float32)
    # per-tap (Cout, Cin) matrices, tap index = kh*3 + kw
    w1_t = jnp.transpose(w1, (2, 3, 0, 1)).reshape(9, c, c).astype(mm_dtype)
    w2_t = jnp.transpose(w2, (2, 3, 0, 1)).reshape(9, c, c).astype(mm_dtype)
    b1_r = b1.reshape(c, 1).astype(jnp.float32)
    b2_r = b2.reshape(c, 1).astype(jnp.float32)

    # ----------------------------- fused kernel -----------------------------
    def kernel(x_ref, w1_ref, b1_ref, w2_ref, b2_ref, o_ref, rpx_ref):
        # lane-index masks for the left/right column reflection (computed once)
        col = jax.lax.broadcasted_iota(jnp.int32, (1, hw), 1) % w
        is_col0 = col == 0
        is_coll = col == (w - 1)

        def build_row_reflected(act):
            # rpx_ref[:, p] holds the row-reflected activation at flat index
            # (p - 1), rows at stride W.  Only 3 block stores; never cleared
            # (the two unwritten junk lanes are select-masked below).
            rpx_ref[:, 1:1 + w] = act[:, w:2 * w]                    # pad row 0   <- img row 1
            rpx_ref[:, 1 + w:1 + w + hw] = act                       # pad rows 1..H
            rpx_ref[:, 1 + w + hw:1 + 2 * w + hw] = \
                act[:, (h - 2) * w:(h - 1) * w]                      # pad row H+1 <- img row H-2

        def conv3x3(act, w_ref, b_ref):
            build_row_reflected(act)
            acc = None
            for kh in range(3):
                base = kh * w
                # lane-axis shifts of -1 / 0 / +1 columns (cheap lane slices,
                # column reflection handled by the selects below)
                s_m1 = rpx_ref[:, base:base + hw]
                s_0 = rpx_ref[:, base + 1:base + 1 + hw]
                s_p1 = rpx_ref[:, base + 2:base + 2 + hw]
                views = (
                    jnp.where(is_col0, s_p1, s_m1),   # kw = 0 (reflect at col 0)
                    s_0,                              # kw = 1
                    jnp.where(is_coll, s_m1, s_p1),   # kw = 2 (reflect at col W-1)
                )
                for kw in range(3):
                    t = jnp.dot(w_ref[kh * 3 + kw],
                                views[kw].astype(mm_dtype),
                                preferred_element_type=jnp.float32)
                    acc = t if acc is None else acc + t
            return acc + b_ref[...]                   # (C,1) lane-broadcast bias

        def inorm(y):
            # two-pass (mean, centered variance) over the H*W lane axis
            mean = jnp.sum(y, axis=1, keepdims=True) * inv_hw
            yc = y - mean
            var = jnp.sum(yc * yc, axis=1, keepdims=True) * inv_hw
            return yc * jax.lax.rsqrt(var + EPS)

        x = x_ref[0]                                                  # (C, HW)
        # stage 1: conv3x3 -> instance-norm -> ReLU   (never leaves VMEM)
        h1 = jnp.maximum(inorm(conv3x3(x, w1_ref, b1_ref)), 0.0)
        # stage 2: conv3x3 -> instance-norm -> residual
        y2 = inorm(conv3x3(h1, w2_ref, b2_ref))
        o_ref[0] = (x + y2).astype(o_ref.dtype)

    # ---- VMEM budget: double-buffered I/O + BOTH weight/bias operands ------
    need = (4 * _tile_bytes(c, hw)                 # x + out, double-buffered
            + 2 * 2 * 9 * _tile_bytes(c, c)        # w1_t + w2_t, double-buffered
            + 2 * 2 * _tile_bytes(c, 1)            # b1 + b2, double-buffered
            + _tile_bytes(c, lrx)                  # row-extended scratch
            + (2 << 20))                           # margin
    try:
        vmem_cap = int(pltpu.get_tpu_info().vmem_capacity_bytes)
    except Exception:
        vmem_cap = 64 << 20                        # v7x lower bound
    vmem_limit = int(min(max(need, 16 << 20), (vmem_cap * 3) // 4))

    out_flat = pl.pallas_call(
        kernel,
        out_shape=jax.ShapeDtypeStruct((n, c, hw), jnp.float32),
        grid=(n,),
        in_specs=[
            pl.BlockSpec((1, c, hw), lambda i: (i, 0, 0)),
            pl.BlockSpec((9, c, c), lambda i: (0, 0, 0)),
            pl.BlockSpec((c, 1), lambda i: (0, 0)),
            pl.BlockSpec((9, c, c), lambda i: (0, 0, 0)),
            pl.BlockSpec((c, 1), lambda i: (0, 0)),
        ],
        out_specs=pl.BlockSpec((1, c, hw), lambda i: (i, 0, 0)),
        scratch_shapes=[pltpu.VMEM((c, lrx), jnp.float32)],
        compiler_params=pltpu.CompilerParams(
            dimension_semantics=("parallel",),
            vmem_limit_bytes=vmem_limit),
    )(x_flat, w1_t, b1_r, w2_t, b2_r)

    return out_flat.reshape(n, c, h, w)


# ---------------------------------------------------------------------------
# Pure-JAX reference (mirrors the PyTorch module exactly)
# ---------------------------------------------------------------------------
def _reference_forward(x, w1, b1, w2, b2):
    def conv(xp, wgt, b):
        y = jax.lax.conv_general_dilated(
            xp, wgt, (1, 1), "VALID",
            dimension_numbers=("NCHW", "OIHW", "NCHW"))
        return y + b.reshape(1, -1, 1, 1)

    def inorm(y):
        mu = jnp.mean(y, axis=(2, 3), keepdims=True)
        var = jnp.mean((y - mu) ** 2, axis=(2, 3), keepdims=True)
        return (y - mu) / jnp.sqrt(var + EPS)

    xp = jnp.pad(x, ((0, 0), (0, 0), (1, 1), (1, 1)), mode="reflect")
    hid = jax.nn.relu(inorm(conv(xp, w1, b1)))
    hp = jnp.pad(hid, ((0, 0), (0, 0), (1, 1), (1, 1)), mode="reflect")
    return x + inorm(conv(hp, w2, b2))


# ---------------------------------------------------------------------------
if __name__ == "__main__":
    key = jax.random.PRNGKey(0)
    N, C, H, W = 2, 4, 16, 16   # dim = C = 4
    k1, k2, k3, k4, k5 = jax.random.split(key, 5)

    x = jax.random.normal(k1, (N, C, H, W), jnp.float32)
    fan_in = 9 * C
    # PyTorch Conv2d weight layout (Cout, Cin, kh, kw); bias = use_bias = True
    w1 = jax.random.normal(k2, (C, C, 3, 3), jnp.float32) / jnp.sqrt(fan_in)
    w2 = jax.random.normal(k3, (C, C, 3, 3), jnp.float32) / jnp.sqrt(fan_in)
    b1 = 0.1 * jax.random.normal(k4, (C,), jnp.float32)
    b2 = 0.1 * jax.random.normal(k5, (C,), jnp.float32)

    out = jax.block_until_ready(resnet_block_forward(x, w1, b1, w2, b2))

    ref = _reference_forward(x, w1, b1, w2, b2)
    assert out.shape == x.shape and out.dtype == jnp.float32
    max_err = float(jnp.max(jnp.abs(out - ref)))
    assert jnp.allclose(out, ref, rtol=1e-4, atol=1e-4), f"max_err={max_err}"

    print("KERNEL_OK")
</pallas_src>

<mosaic_0001>
module attributes {stable_mosaic.version = 11 : i64} {
  func.func @kernel(%arg0: i32, %arg1: memref<1x4x256xf32, #tpu.memory_space<vmem>>, %arg2: memref<9x4x4xf32, #tpu.memory_space<vmem>>, %arg3: memref<4x1xf32, #tpu.memory_space<vmem>>, %arg4: memref<9x4x4xf32, #tpu.memory_space<vmem>>, %arg5: memref<4x1xf32, #tpu.memory_space<vmem>>, %arg6: memref<1x4x256xf32, #tpu.memory_space<vmem>>, %arg7: memref<4x384xf32, #tpu.memory_space<vmem>>) attributes {dimension_semantics = [#tpu.dimension_semantics<parallel>], iteration_bounds = array<i64: 2>, scalar_prefetch = 0 : i64, scratch_operands = 1 : i64, tpu.core_type = #tpu.core_type<tc>, window_params = [{transform_indices = @transform_0, window_bounds = array<i64: 1, 4, 256>}, {pipeline_mode = #tpu.pipeline_mode<synchronous>, transform_indices = @transform_1, window_bounds = array<i64: 9, 4, 4>}, {pipeline_mode = #tpu.pipeline_mode<synchronous>, transform_indices = @transform_2, window_bounds = array<i64: 4, 1>}, {pipeline_mode = #tpu.pipeline_mode<synchronous>, transform_indices = @transform_3, window_bounds = array<i64: 9, 4, 4>}, {pipeline_mode = #tpu.pipeline_mode<synchronous>, transform_indices = @transform_4, window_bounds = array<i64: 4, 1>}, {transform_indices = @transform_5, window_bounds = array<i64: 1, 4, 256>}]} {
    %0 = tpu.iota {dimensions = array<i32: 1>} : vector<1x256xi32>
    %c16_i32 = arith.constant 16 : i32
    %c0_i32 = arith.constant 0 : i32
    %1 = arith.cmpi eq, %c16_i32, %c0_i32 : i32
    %c1_i32 = arith.constant 1 : i32
    %2 = arith.select %1, %c1_i32, %c16_i32 : i32
    %3 = vector.broadcast %2 : i32 to vector<1x256xi32>
    %4 = arith.remsi %0, %3 : vector<1x256xi32>
    %c0_i32_0 = arith.constant 0 : i32
    %5 = vector.broadcast %c0_i32_0 : i32 to vector<1x256xi32>
    %6 = arith.cmpi ne, %4, %5 : vector<1x256xi32>
    %c0_i32_1 = arith.constant 0 : i32
    %7 = vector.broadcast %c0_i32_1 : i32 to vector<1x256xi32>
    %8 = arith.cmpi slt, %4, %7 : vector<1x256xi32>
    %c0_i32_2 = arith.constant 0 : i32
    %9 = arith.cmpi slt, %2, %c0_i32_2 : i32
    %10 = vector.broadcast %9 : i1 to vector<1x256xi1>
    %11 = vector.broadcast %10 : vector<1x256xi1> to vector<1x256xi1>
    %12 = arith.xori %8, %11 : vector<1x256xi1>
    %13 = arith.andi %12, %6 : vector<1x256xi1>
    %14 = vector.broadcast %2 : i32 to vector<1x256xi32>
    %15 = arith.addi %4, %14 : vector<1x256xi32>
    %16 = arith.select %13, %15, %4 : vector<1x256xi1>, vector<1x256xi32>
    %c0_i32_3 = arith.constant 0 : i32
    %17 = vector.broadcast %c0_i32_3 : i32 to vector<1x256xi32>
    %18 = arith.cmpi eq, %16, %17 : vector<1x256xi32>
    %c15_i32 = arith.constant 15 : i32
    %19 = vector.broadcast %c15_i32 : i32 to vector<1x256xi32>
    %20 = arith.cmpi eq, %16, %19 : vector<1x256xi32>
    %c0 = arith.constant 0 : index
    %c0_4 = arith.constant 0 : index
    %c0_5 = arith.constant 0 : index
    %21 = vector.load %arg1[%c0, %c0_4, %c0_5] : memref<1x4x256xf32, #tpu.memory_space<vmem>>, vector<1x4x256xf32>
    %22 = vector.shape_cast %21 : vector<1x4x256xf32> to vector<4x256xf32>
    %23 = vector.extract_strided_slice %22 {offsets = [0, 16], sizes = [4, 16], strides = [1, 1]} : vector<4x256xf32> to vector<4x16xf32>
    %c0_6 = arith.constant 0 : index
    %c1 = arith.constant 1 : index
    %24 = vector.load %arg7[%c0_6, %c1] : memref<4x384xf32, #tpu.memory_space<vmem>>, vector<4x16xf32>
    tpu.vector_store %arg7[%c0_6, %c1], %23 {strides = array<i32>} : memref<4x384xf32, #tpu.memory_space<vmem>>, vector<4x16xf32>,
    %c0_7 = arith.constant 0 : index
    %c17 = arith.constant 17 : index
    %25 = vector.load %arg7[%c0_7, %c17] : memref<4x384xf32, #tpu.memory_space<vmem>>, vector<4x256xf32>
    tpu.vector_store %arg7[%c0_7, %c17], %22 {strides = array<i32>} : memref<4x384xf32, #tpu.memory_space<vmem>>, vector<4x256xf32>,
    %26 = vector.extract_strided_slice %22 {offsets = [0, 224], sizes = [4, 16], strides = [1, 1]} : vector<4x256xf32> to vector<4x16xf32>
    %c0_8 = arith.constant 0 : index
    %c273 = arith.constant 273 : index
    %27 = vector.load %arg7[%c0_8, %c273] : memref<4x384xf32, #tpu.memory_space<vmem>>, vector<4x16xf32>
    tpu.vector_store %arg7[%c0_8, %c273], %26 {strides = array<i32>} : memref<4x384xf32, #tpu.memory_space<vmem>>, vector<4x16xf32>,
    %c0_9 = arith.constant 0 : index
    %c0_10 = arith.constant 0 : index
    %28 = vector.load %arg7[%c0_9, %c0_10] : memref<4x384xf32, #tpu.memory_space<vmem>>, vector<4x256xf32>
    %c0_11 = arith.constant 0 : index
    %c1_12 = arith.constant 1 : index
    %29 = vector.load %arg7[%c0_11, %c1_12] : memref<4x384xf32, #tpu.memory_space<vmem>>, vector<4x256xf32>
    %c0_13 = arith.constant 0 : index
    %c2 = arith.constant 2 : index
    %30 = vector.load %arg7[%c0_13, %c2] : memref<4x384xf32, #tpu.memory_space<vmem>>, vector<4x256xf32>
    %31 = vector.shape_cast %18 : vector<1x256xi1> to vector<1x256xi1>
    %32 = vector.broadcast %31 : vector<1x256xi1> to vector<4x256xi1>
    %33 = arith.select %32, %30, %28 : vector<4x256xi1>, vector<4x256xf32>
    %34 = vector.shape_cast %20 : vector<1x256xi1> to vector<1x256xi1>
    %35 = vector.broadcast %34 : vector<1x256xi1> to vector<4x256xi1>
    %36 = arith.select %35, %28, %30 : vector<4x256xi1>, vector<4x256xf32>
    %c0_14 = arith.constant 0 : index
    %c0_15 = arith.constant 0 : index
    %c0_16 = arith.constant 0 : index
    %37 = vector.load %arg2[%c0_14, %c0_15, %c0_16] : memref<9x4x4xf32, #tpu.memory_space<vmem>>, vector<1x4x4xf32>
    %38 = vector.shape_cast %37 : vector<1x4x4xf32> to vector<4x4xf32>
    %cst = arith.constant dense<0.000000e+00> : vector<4x256xf32>
    %39 = tpu.matmul %38, %33, %cst {dimension_numbers = #tpu.dot_dimension_numbers<[1], [0], [0], [1], [0, 0, 1, 1], [], []>} : vector<4x4xf32>, vector<4x256xf32>, vector<4x256xf32> -> vector<4x256xf32>
    %c1_17 = arith.constant 1 : index
    %c0_18 = arith.constant 0 : index
    %c0_19 = arith.constant 0 : index
    %40 = vector.load %arg2[%c1_17, %c0_18, %c0_19] : memref<9x4x4xf32, #tpu.memory_space<vmem>>, vector<1x4x4xf32>
    %41 = vector.shape_cast %40 : vector<1x4x4xf32> to vector<4x4xf32>
    %cst_20 = arith.constant dense<0.000000e+00> : vector<4x256xf32>
    %42 = tpu.matmul %41, %29, %cst_20 {dimension_numbers = #tpu.dot_dimension_numbers<[1], [0], [0], [1], [0, 0, 1, 1], [], []>} : vector<4x4xf32>, vector<4x256xf32>, vector<4x256xf32> -> vector<4x256xf32>
    %43 = arith.addf %39, %42 : vector<4x256xf32>
    %c2_21 = arith.constant 2 : index
    %c0_22 = arith.constant 0 : index
    %c0_23 = arith.constant 0 : index
    %44 = vector.load %arg2[%c2_21, %c0_22, %c0_23] : memref<9x4x4xf32, #tpu.memory_space<vmem>>, vector<1x4x4xf32>
    %45 = vector.shape_cast %44 : vector<1x4x4xf32> to vector<4x4xf32>
    %cst_24 = arith.constant dense<0.000000e+00> : vector<4x256xf32>
    %46 = tpu.matmul %45, %36, %cst_24 {dimension_numbers = #tpu.dot_dimension_numbers<[1], [0], [0], [1], [0, 0, 1, 1], [], []>} : vector<4x4xf32>, vector<4x256xf32>, vector<4x256xf32> -> vector<4x256xf32>
    %47 = arith.addf %43, %46 : vector<4x256xf32>
    %c0_25 = arith.constant 0 : index
    %c16 = arith.constant 16 : index
    %48 = vector.load %arg7[%c0_25, %c16] : memref<4x384xf32, #tpu.memory_space<vmem>>, vector<4x256xf32>
    %c0_26 = arith.constant 0 : index
    %c17_27 = arith.constant 17 : index
    %49 = vector.load %arg7[%c0_26, %c17_27] : memref<4x384xf32, #tpu.memory_space<vmem>>, vector<4x256xf32>
    %c0_28 = arith.constant 0 : index
    %c18 = arith.constant 18 : index
    %50 = vector.load %arg7[%c0_28, %c18] : memref<4x384xf32, #tpu.memory_space<vmem>>, vector<4x256xf32>
    %51 = vector.shape_cast %18 : vector<1x256xi1> to vector<1x256xi1>
    %52 = vector.broadcast %51 : vector<1x256xi1> to vector<4x256xi1>
    %53 = arith.select %52, %50, %48 : vector<4x256xi1>, vector<4x256xf32>
    %54 = vector.shape_cast %20 : vector<1x256xi1> to vector<1x256xi1>
    %55 = vector.broadcast %54 : vector<1x256xi1> to vector<4x256xi1>
    %56 = arith.select %55, %48, %50 : vector<4x256xi1>, vector<4x256xf32>
    %c3 = arith.constant 3 : index
    %c0_29 = arith.constant 0 : index
    %c0_30 = arith.constant 0 : index
    %57 = vector.load %arg2[%c3, %c0_29, %c0_30] : memref<9x4x4xf32, #tpu.memory_space<vmem>>, vector<1x4x4xf32>
    %58 = vector.shape_cast %57 : vector<1x4x4xf32> to vector<4x4xf32>
    %cst_31 = arith.constant dense<0.000000e+00> : vector<4x256xf32>
    %59 = tpu.matmul %58, %53, %cst_31 {dimension_numbers = #tpu.dot_dimension_numbers<[1], [0], [0], [1], [0, 0, 1, 1], [], []>} : vector<4x4xf32>, vector<4x256xf32>, vector<4x256xf32> -> vector<4x256xf32>
    %60 = arith.addf %47, %59 : vector<4x256xf32>
    %c4 = arith.constant 4 : index
    %c0_32 = arith.constant 0 : index
    %c0_33 = arith.constant 0 : index
    %61 = vector.load %arg2[%c4, %c0_32, %c0_33] : memref<9x4x4xf32, #tpu.memory_space<vmem>>, vector<1x4x4xf32>
    %62 = vector.shape_cast %61 : vector<1x4x4xf32> to vector<4x4xf32>
    %cst_34 = arith.constant dense<0.000000e+00> : vector<4x256xf32>
    %63 = tpu.matmul %62, %49, %cst_34 {dimension_numbers = #tpu.dot_dimension_numbers<[1], [0], [0], [1], [0, 0, 1, 1], [], []>} : vector<4x4xf32>, vector<4x256xf32>, vector<4x256xf32> -> vector<4x256xf32>
    %64 = arith.addf %60, %63 : vector<4x256xf32>
    %c5 = arith.constant 5 : index
    %c0_35 = arith.constant 0 : index
    %c0_36 = arith.constant 0 : index
    %65 = vector.load %arg2[%c5, %c0_35, %c0_36] : memref<9x4x4xf32, #tpu.memory_space<vmem>>, vector<1x4x4xf32>
    %66 = vector.shape_cast %65 : vector<1x4x4xf32> to vector<4x4xf32>
    %cst_37 = arith.constant dense<0.000000e+00> : vector<4x256xf32>
    %67 = tpu.matmul %66, %56, %cst_37 {dimension_numbers = #tpu.dot_dimension_numbers<[1], [0], [0], [1], [0, 0, 1, 1], [], []>} : vector<4x4xf32>, vector<4x256xf32>, vector<4x256xf32> -> vector<4x256xf32>
    %68 = arith.addf %64, %67 : vector<4x256xf32>
    %c0_38 = arith.constant 0 : index
    %c32 = arith.constant 32 : index
    %69 = vector.load %arg7[%c0_38, %c32] : memref<4x384xf32, #tpu.memory_space<vmem>>, vector<4x256xf32>
    %c0_39 = arith.constant 0 : index
    %c33 = arith.constant 33 : index
    %70 = vector.load %arg7[%c0_39, %c33] : memref<4x384xf32, #tpu.memory_space<vmem>>, vector<4x256xf32>
    %c0_40 = arith.constant 0 : index
    %c34 = arith.constant 34 : index
    %71 = vector.load %arg7[%c0_40, %c34] : memref<4x384xf32, #tpu.memory_space<vmem>>, vector<4x256xf32>
    %72 = vector.shape_cast %18 : vector<1x256xi1> to vector<1x256xi1>
    %73 = vector.broadcast %72 : vector<1x256xi1> to vector<4x256xi1>
    %74 = arith.select %73, %71, %69 : vector<4x256xi1>, vector<4x256xf32>
    %75 = vector.shape_cast %20 : vector<1x256xi1> to vector<1x256xi1>
    %76 = vector.broadcast %75 : vector<1x256xi1> to vector<4x256xi1>
    %77 = arith.select %76, %69, %71 : vector<4x256xi1>, vector<4x256xf32>
    %c6 = arith.constant 6 : index
    %c0_41 = arith.constant 0 : index
    %c0_42 = arith.constant 0 : index
    %78 = vector.load %arg2[%c6, %c0_41, %c0_42] : memref<9x4x4xf32, #tpu.memory_space<vmem>>, vector<1x4x4xf32>
    %79 = vector.shape_cast %78 : vector<1x4x4xf32> to vector<4x4xf32>
    %cst_43 = arith.constant dense<0.000000e+00> : vector<4x256xf32>
    %80 = tpu.matmul %79, %74, %cst_43 {dimension_numbers = #tpu.dot_dimension_numbers<[1], [0], [0], [1], [0, 0, 1, 1], [], []>} : vector<4x4xf32>, vector<4x256xf32>, vector<4x256xf32> -> vector<4x256xf32>
    %81 = arith.addf %68, %80 : vector<4x256xf32>
    %c7 = arith.constant 7 : index
    %c0_44 = arith.constant 0 : index
    %c0_45 = arith.constant 0 : index
    %82 = vector.load %arg2[%c7, %c0_44, %c0_45] : memref<9x4x4xf32, #tpu.memory_space<vmem>>, vector<1x4x4xf32>
    %83 = vector.shape_cast %82 : vector<1x4x4xf32> to vector<4x4xf32>
    %cst_46 = arith.constant dense<0.000000e+00> : vector<4x256xf32>
    %84 = tpu.matmul %83, %70, %cst_46 {dimension_numbers = #tpu.dot_dimension_numbers<[1], [0], [0], [1], [0, 0, 1, 1], [], []>} : vector<4x4xf32>, vector<4x256xf32>, vector<4x256xf32> -> vector<4x256xf32>
    %85 = arith.addf %81, %84 : vector<4x256xf32>
    %c8 = arith.constant 8 : index
    %c0_47 = arith.constant 0 : index
    %c0_48 = arith.constant 0 : index
    %86 = vector.load %arg2[%c8, %c0_47, %c0_48] : memref<9x4x4xf32, #tpu.memory_space<vmem>>, vector<1x4x4xf32>
    %87 = vector.shape_cast %86 : vector<1x4x4xf32> to vector<4x4xf32>
    %cst_49 = arith.constant dense<0.000000e+00> : vector<4x256xf32>
    %88 = tpu.matmul %87, %77, %cst_49 {dimension_numbers = #tpu.dot_dimension_numbers<[1], [0], [0], [1], [0, 0, 1, 1], [], []>} : vector<4x4xf32>, vector<4x256xf32>, vector<4x256xf32> -> vector<4x256xf32>
    %89 = arith.addf %85, %88 : vector<4x256xf32>
    %c0_50 = arith.constant 0 : index
    %c0_51 = arith.constant 0 : index
    %90 = vector.load %arg3[%c0_50, %c0_51] : memref<4x1xf32, #tpu.memory_space<vmem>>, vector<4x1xf32>
    %91 = vector.broadcast %90 : vector<4x1xf32> to vector<4x256xf32>
    %92 = arith.addf %89, %91 : vector<4x256xf32>
    %cst_52 = arith.constant dense<0.000000e+00> : vector<4xf32>
    %93 = vector.multi_reduction <add>, %92, %cst_52 [1] : vector<4x256xf32> to vector<4xf32>
    %94 = vector.shape_cast %93 : vector<4xf32> to vector<4x1xf32>
    %cst_53 = arith.constant 3.906250e-03 : f32
    %95 = vector.broadcast %cst_53 : f32 to vector<4x1xf32>
    %96 = arith.mulf %94, %95 : vector<4x1xf32>
    %97 = vector.broadcast %96 : vector<4x1xf32> to vector<4x256xf32>
    %98 = arith.subf %92, %97 : vector<4x256xf32>
    %99 = arith.mulf %98, %98 : vector<4x256xf32>
    %cst_54 = arith.constant dense<0.000000e+00> : vector<4xf32>
    %100 = vector.multi_reduction <add>, %99, %cst_54 [1] : vector<4x256xf32> to vector<4xf32>
    %101 = vector.shape_cast %100 : vector<4xf32> to vector<4x1xf32>
    %cst_55 = arith.constant 3.906250e-03 : f32
    %102 = vector.broadcast %cst_55 : f32 to vector<4x1xf32>
    %103 = arith.mulf %101, %102 : vector<4x1xf32>
    %cst_56 = arith.constant 9.99999974E-6 : f32
    %104 = vector.broadcast %cst_56 : f32 to vector<4x1xf32>
    %105 = arith.addf %103, %104 : vector<4x1xf32>
    %106 = math.rsqrt %105 : vector<4x1xf32>
    %107 = vector.broadcast %106 : vector<4x1xf32> to vector<4x256xf32>
    %108 = arith.mulf %98, %107 : vector<4x256xf32>
    %cst_57 = arith.constant 0.000000e+00 : f32
    %109 = vector.broadcast %cst_57 : f32 to vector<4x256xf32>
    %110 = arith.maximumf %108, %109 : vector<4x256xf32>
    %111 = vector.extract_strided_slice %110 {offsets = [0, 16], sizes = [4, 16], strides = [1, 1]} : vector<4x256xf32> to vector<4x16xf32>
    %c0_58 = arith.constant 0 : index
    %c1_59 = arith.constant 1 : index
    %112 = vector.load %arg7[%c0_58, %c1_59] : memref<4x384xf32, #tpu.memory_space<vmem>>, vector<4x16xf32>
    tpu.vector_store %arg7[%c0_58, %c1_59], %111 {strides = array<i32>} : memref<4x384xf32, #tpu.memory_space<vmem>>, vector<4x16xf32>,
    %c0_60 = arith.constant 0 : index
    %c17_61 = arith.constant 17 : index
    %113 = vector.load %arg7[%c0_60, %c17_61] : memref<4x384xf32, #tpu.memory_space<vmem>>, vector<4x256xf32>
    tpu.vector_store %arg7[%c0_60, %c17_61], %110 {strides = array<i32>} : memref<4x384xf32, #tpu.memory_space<vmem>>, vector<4x256xf32>,
    %114 = vector.extract_strided_slice %110 {offsets = [0, 224], sizes = [4, 16], strides = [1, 1]} : vector<4x256xf32> to vector<4x16xf32>
    %c0_62 = arith.constant 0 : index
    %c273_63 = arith.constant 273 : index
    %115 = vector.load %arg7[%c0_62, %c273_63] : memref<4x384xf32, #tpu.memory_space<vmem>>, vector<4x16xf32>
    tpu.vector_store %arg7[%c0_62, %c273_63], %114 {strides = array<i32>} : memref<4x384xf32, #tpu.memory_space<vmem>>, vector<4x16xf32>,
    %c0_64 = arith.constant 0 : index
    %c0_65 = arith.constant 0 : index
    %116 = vector.load %arg7[%c0_64, %c0_65] : memref<4x384xf32, #tpu.memory_space<vmem>>, vector<4x256xf32>
    %c0_66 = arith.constant 0 : index
    %c1_67 = arith.constant 1 : index
    %117 = vector.load %arg7[%c0_66, %c1_67] : memref<4x384xf32, #tpu.memory_space<vmem>>, vector<4x256xf32>
    %c0_68 = arith.constant 0 : index
    %c2_69 = arith.constant 2 : index
    %118 = vector.load %arg7[%c0_68, %c2_69] : memref<4x384xf32, #tpu.memory_space<vmem>>, vector<4x256xf32>
    %119 = vector.shape_cast %18 : vector<1x256xi1> to vector<1x256xi1>
    %120 = vector.broadcast %119 : vector<1x256xi1> to vector<4x256xi1>
    %121 = arith.select %120, %118, %116 : vector<4x256xi1>, vector<4x256xf32>
    %122 = vector.shape_cast %20 : vector<1x256xi1> to vector<1x256xi1>
    %123 = vector.broadcast %122 : vector<1x256xi1> to vector<4x256xi1>
    %124 = arith.select %123, %116, %118 : vector<4x256xi1>, vector<4x256xf32>
    %c0_70 = arith.constant 0 : index
    %c0_71 = arith.constant 0 : index
    %c0_72 = arith.constant 0 : index
    %125 = vector.load %arg4[%c0_70, %c0_71, %c0_72] : memref<9x4x4xf32, #tpu.memory_space<vmem>>, vector<1x4x4xf32>
    %126 = vector.shape_cast %125 : vector<1x4x4xf32> to vector<4x4xf32>
    %cst_73 = arith.constant dense<0.000000e+00> : vector<4x256xf32>
    %127 = tpu.matmul %126, %121, %cst_73 {dimension_numbers = #tpu.dot_dimension_numbers<[1], [0], [0], [1], [0, 0, 1, 1], [], []>} : vector<4x4xf32>, vector<4x256xf32>, vector<4x256xf32> -> vector<4x256xf32>
    %c1_74 = arith.constant 1 : index
    %c0_75 = arith.constant 0 : index
    %c0_76 = arith.constant 0 : index
    %128 = vector.load %arg4[%c1_74, %c0_75, %c0_76] : memref<9x4x4xf32, #tpu.memory_space<vmem>>, vector<1x4x4xf32>
    %129 = vector.shape_cast %128 : vector<1x4x4xf32> to vector<4x4xf32>
    %cst_77 = arith.constant dense<0.000000e+00> : vector<4x256xf32>
    %130 = tpu.matmul %129, %117, %cst_77 {dimension_numbers = #tpu.dot_dimension_numbers<[1], [0], [0], [1], [0, 0, 1, 1], [], []>} : vector<4x4xf32>, vector<4x256xf32>, vector<4x256xf32> -> vector<4x256xf32>
    %131 = arith.addf %127, %130 : vector<4x256xf32>
    %c2_78 = arith.constant 2 : index
    %c0_79 = arith.constant 0 : index
    %c0_80 = arith.constant 0 : index
    %132 = vector.load %arg4[%c2_78, %c0_79, %c0_80] : memref<9x4x4xf32, #tpu.memory_space<vmem>>, vector<1x4x4xf32>
    %133 = vector.shape_cast %132 : vector<1x4x4xf32> to vector<4x4xf32>
    %cst_81 = arith.constant dense<0.000000e+00> : vector<4x256xf32>
    %134 = tpu.matmul %133, %124, %cst_81 {dimension_numbers = #tpu.dot_dimension_numbers<[1], [0], [0], [1], [0, 0, 1, 1], [], []>} : vector<4x4xf32>, vector<4x256xf32>, vector<4x256xf32> -> vector<4x256xf32>
    %135 = arith.addf %131, %134 : vector<4x256xf32>
    %c0_82 = arith.constant 0 : index
    %c16_83 = arith.constant 16 : index
    %136 = vector.load %arg7[%c0_82, %c16_83] : memref<4x384xf32, #tpu.memory_space<vmem>>, vector<4x256xf32>
    %c0_84 = arith.constant 0 : index
    %c17_85 = arith.constant 17 : index
    %137 = vector.load %arg7[%c0_84, %c17_85] : memref<4x384xf32, #tpu.memory_space<vmem>>, vector<4x256xf32>
    %c0_86 = arith.constant 0 : index
    %c18_87 = arith.constant 18 : index
    %138 = vector.load %arg7[%c0_86, %c18_87] : memref<4x384xf32, #tpu.memory_space<vmem>>, vector<4x256xf32>
    %139 = vector.shape_cast %18 : vector<1x256xi1> to vector<1x256xi1>
    %140 = vector.broadcast %139 : vector<1x256xi1> to vector<4x256xi1>
    %141 = arith.select %140, %138, %136 : vector<4x256xi1>, vector<4x256xf32>
    %142 = vector.shape_cast %20 : vector<1x256xi1> to vector<1x256xi1>
    %143 = vector.broadcast %142 : vector<1x256xi1> to vector<4x256xi1>
    %144 = arith.select %143, %136, %138 : vector<4x256xi1>, vector<4x256xf32>
    %c3_88 = arith.constant 3 : index
    %c0_89 = arith.constant 0 : index
    %c0_90 = arith.constant 0 : index
    %145 = vector.load %arg4[%c3_88, %c0_89, %c0_90] : memref<9x4x4xf32, #tpu.memory_space<vmem>>, vector<1x4x4xf32>
    %146 = vector.shape_cast %145 : vector<1x4x4xf32> to vector<4x4xf32>
    %cst_91 = arith.constant dense<0.000000e+00> : vector<4x256xf32>
    %147 = tpu.matmul %146, %141, %cst_91 {dimension_numbers = #tpu.dot_dimension_numbers<[1], [0], [0], [1], [0, 0, 1, 1], [], []>} : vector<4x4xf32>, vector<4x256xf32>, vector<4x256xf32> -> vector<4x256xf32>
    %148 = arith.addf %135, %147 : vector<4x256xf32>
    %c4_92 = arith.constant 4 : index
    %c0_93 = arith.constant 0 : index
    %c0_94 = arith.constant 0 : index
    %149 = vector.load %arg4[%c4_92, %c0_93, %c0_94] : memref<9x4x4xf32, #tpu.memory_space<vmem>>, vector<1x4x4xf32>
    %150 = vector.shape_cast %149 : vector<1x4x4xf32> to vector<4x4xf32>
    %cst_95 = arith.constant dense<0.000000e+00> : vector<4x256xf32>
    %151 = tpu.matmul %150, %137, %cst_95 {dimension_numbers = #tpu.dot_dimension_numbers<[1], [0], [0], [1], [0, 0, 1, 1], [], []>} : vector<4x4xf32>, vector<4x256xf32>, vector<4x256xf32> -> vector<4x256xf32>
    %152 = arith.addf %148, %151 : vector<4x256xf32>
    %c5_96 = arith.constant 5 : index
    %c0_97 = arith.constant 0 : index
    %c0_98 = arith.constant 0 : index
    %153 = vector.load %arg4[%c5_96, %c0_97, %c0_98] : memref<9x4x4xf32, #tpu.memory_space<vmem>>, vector<1x4x4xf32>
    %154 = vector.shape_cast %153 : vector<1x4x4xf32> to vector<4x4xf32>
    %cst_99 = arith.constant dense<0.000000e+00> : vector<4x256xf32>
    %155 = tpu.matmul %154, %144, %cst_99 {dimension_numbers = #tpu.dot_dimension_numbers<[1], [0], [0], [1], [0, 0, 1, 1], [], []>} : vector<4x4xf32>, vector<4x256xf32>, vector<4x256xf32> -> vector<4x256xf32>
    %156 = arith.addf %152, %155 : vector<4x256xf32>
    %c0_100 = arith.constant 0 : index
    %c32_101 = arith.constant 32 : index
    %157 = vector.load %arg7[%c0_100, %c32_101] : memref<4x384xf32, #tpu.memory_space<vmem>>, vector<4x256xf32>
    %c0_102 = arith.constant 0 : index
    %c33_103 = arith.constant 33 : index
    %158 = vector.load %arg7[%c0_102, %c33_103] : memref<4x384xf32, #tpu.memory_space<vmem>>, vector<4x256xf32>
    %c0_104 = arith.constant 0 : index
    %c34_105 = arith.constant 34 : index
    %159 = vector.load %arg7[%c0_104, %c34_105] : memref<4x384xf32, #tpu.memory_space<vmem>>, vector<4x256xf32>
    %160 = vector.shape_cast %18 : vector<1x256xi1> to vector<1x256xi1>
    %161 = vector.broadcast %160 : vector<1x256xi1> to vector<4x256xi1>
    %162 = arith.select %161, %159, %157 : vector<4x256xi1>, vector<4x256xf32>
    %163 = vector.shape_cast %20 : vector<1x256xi1> to vector<1x256xi1>
    %164 = vector.broadcast %163 : vector<1x256xi1> to vector<4x256xi1>
    %165 = arith.select %164, %157, %159 : vector<4x256xi1>, vector<4x256xf32>
    %c6_106 = arith.constant 6 : index
    %c0_107 = arith.constant 0 : index
    %c0_108 = arith.constant 0 : index
    %166 = vector.load %arg4[%c6_106, %c0_107, %c0_108] : memref<9x4x4xf32, #tpu.memory_space<vmem>>, vector<1x4x4xf32>
    %167 = vector.shape_cast %166 : vector<1x4x4xf32> to vector<4x4xf32>
    %cst_109 = arith.constant dense<0.000000e+00> : vector<4x256xf32>
    %168 = tpu.matmul %167, %162, %cst_109 {dimension_numbers = #tpu.dot_dimension_numbers<[1], [0], [0], [1], [0, 0, 1, 1], [], []>} : vector<4x4xf32>, vector<4x256xf32>, vector<4x256xf32> -> vector<4x256xf32>
    %169 = arith.addf %156, %168 : vector<4x256xf32>
    %c7_110 = arith.constant 7 : index
    %c0_111 = arith.constant 0 : index
    %c0_112 = arith.constant 0 : index
    %170 = vector.load %arg4[%c7_110, %c0_111, %c0_112] : memref<9x4x4xf32, #tpu.memory_space<vmem>>, vector<1x4x4xf32>
    %171 = vector.shape_cast %170 : vector<1x4x4xf32> to vector<4x4xf32>
    %cst_113 = arith.constant dense<0.000000e+00> : vector<4x256xf32>
    %172 = tpu.matmul %171, %158, %cst_113 {dimension_numbers = #tpu.dot_dimension_numbers<[1], [0], [0], [1], [0, 0, 1, 1], [], []>} : vector<4x4xf32>, vector<4x256xf32>, vector<4x256xf32> -> vector<4x256xf32>
    %173 = arith.addf %169, %172 : vector<4x256xf32>
    %c8_114 = arith.constant 8 : index
    %c0_115 = arith.constant 0 : index
    %c0_116 = arith.constant 0 : index
    %174 = vector.load %arg4[%c8_114, %c0_115, %c0_116] : memref<9x4x4xf32, #tpu.memory_space<vmem>>, vector<1x4x4xf32>
    %175 = vector.shape_cast %174 : vector<1x4x4xf32> to vector<4x4xf32>
    %cst_117 = arith.constant dense<0.000000e+00> : vector<4x256xf32>
    %176 = tpu.matmul %175, %165, %cst_117 {dimension_numbers = #tpu.dot_dimension_numbers<[1], [0], [0], [1], [0, 0, 1, 1], [], []>} : vector<4x4xf32>, vector<4x256xf32>, vector<4x256xf32> -> vector<4x256xf32>
    %177 = arith.addf %173, %176 : vector<4x256xf32>
    %c0_118 = arith.constant 0 : index
    %c0_119 = arith.constant 0 : index
    %178 = vector.load %arg5[%c0_118, %c0_119] : memref<4x1xf32, #tpu.memory_space<vmem>>, vector<4x1xf32>
    %179 = vector.broadcast %178 : vector<4x1xf32> to vector<4x256xf32>
    %180 = arith.addf %177, %179 : vector<4x256xf32>
    %cst_120 = arith.constant dense<0.000000e+00> : vector<4xf32>
    %181 = vector.multi_reduction <add>, %180, %cst_120 [1] : vector<4x256xf32> to vector<4xf32>
    %182 = vector.shape_cast %181 : vector<4xf32> to vector<4x1xf32>
    %cst_121 = arith.constant 3.906250e-03 : f32
    %183 = vector.broadcast %cst_121 : f32 to vector<4x1xf32>
    %184 = arith.mulf %182, %183 : vector<4x1xf32>
    %185 = vector.broadcast %184 : vector<4x1xf32> to vector<4x256xf32>
    %186 = arith.subf %180, %185 : vector<4x256xf32>
    %187 = arith.mulf %186, %186 : vector<4x256xf32>
    %cst_122 = arith.constant dense<0.000000e+00> : vector<4xf32>
    %188 = vector.multi_reduction <add>, %187, %cst_122 [1] : vector<4x256xf32> to vector<4xf32>
    %189 = vector.shape_cast %188 : vector<4xf32> to vector<4x1xf32>
    %cst_123 = arith.constant 3.906250e-03 : f32
    %190 = vector.broadcast %cst_123 : f32 to vector<4x1xf32>
    %191 = arith.mulf %189, %190 : vector<4x1xf32>
    %cst_124 = arith.constant 9.99999974E-6 : f32
    %192 = vector.broadcast %cst_124 : f32 to vector<4x1xf32>
    %193 = arith.addf %191, %192 : vector<4x1xf32>
    %194 = math.rsqrt %193 : vector<4x1xf32>
    %195 = vector.broadcast %194 : vector<4x1xf32> to vector<4x256xf32>
    %196 = arith.mulf %186, %195 : vector<4x256xf32>
    %197 = arith.addf %22, %196 : vector<4x256xf32>
    %c0_125 = arith.constant 0 : index
    %c0_126 = arith.constant 0 : index
    %c0_127 = arith.constant 0 : index
    %198 = vector.load %arg6[%c0_125, %c0_126, %c0_127] : memref<1x4x256xf32, #tpu.memory_space<vmem>>, vector<1x4x256xf32>
    %199 = vector.shape_cast %198 : vector<1x4x256xf32> to vector<4x256xf32>
    %200 = vector.shape_cast %197 : vector<4x256xf32> to vector<1x4x256xf32>
    tpu.vector_store %arg6[%c0_125, %c0_126, %c0_127], %200 {strides = array<i32>} : memref<1x4x256xf32, #tpu.memory_space<vmem>>, vector<1x4x256xf32>,
    return
  }
  func.func @transform_0(%arg0: i32) -> (i32, i32, i32) {
    %c0_i32 = arith.constant 0 : i32
    %c0_i32_0 = arith.constant 0 : i32
    %c0_i32_1 = arith.constant 0 : i32
    return %arg0, %c0_i32, %c0_i32_0 : i32, i32, i32
  }
  func.func @transform_1(%arg0: i32) -> (i32, i32, i32) {
    %c0_i32 = arith.constant 0 : i32
    %c0_i32_0 = arith.constant 0 : i32
    %c0_i32_1 = arith.constant 0 : i32
    %c0_i32_2 = arith.constant 0 : i32
    return %c0_i32, %c0_i32_0, %c0_i32_1 : i32, i32, i32
  }
  func.func @transform_2(%arg0: i32) -> (i32, i32) {
    %c0_i32 = arith.constant 0 : i32
    %c0_i32_0 = arith.constant 0 : i32
    %c0_i32_1 = arith.constant 0 : i32
    return %c0_i32, %c0_i32_0 : i32, i32
  }
  func.func @transform_3(%arg0: i32) -> (i32, i32, i32) {
    %c0_i32 = arith.constant 0 : i32
    %c0_i32_0 = arith.constant 0 : i32
    %c0_i32_1 = arith.constant 0 : i32
    %c0_i32_2 = arith.constant 0 : i32
    return %c0_i32, %c0_i32_0, %c0_i32_1 : i32, i32, i32
  }
  func.func @transform_4(%arg0: i32) -> (i32, i32) {
    %c0_i32 = arith.constant 0 : i32
    %c0_i32_0 = arith.constant 0 : i32
    %c0_i32_1 = arith.constant 0 : i32
    return %c0_i32, %c0_i32_0 : i32, i32
  }
  func.func @transform_5(%arg0: i32) -> (i32, i32, i32) {
    %c0_i32 = arith.constant 0 : i32
    %c0_i32_0 = arith.constant 0 : i32
    %c0_i32_1 = arith.constant 0 : i32
    return %arg0, %c0_i32, %c0_i32_0 : i32, i32, i32
  }
}

</mosaic_0001>

<llo_original>
// kernel: resnet_block_forward.1
$region0: #{resnet_block_forward.1}
  #allocation0 [shape = 'u32[]', space=smem, size = 0x4, offset = 0x4, fixed_abs, tag = 'smem constant byte address 0x4 - core index']
  #allocation1 [shape = 'u32[144,128]{1,0:T(1,128)}', space=vmem, size = 0x12000, scoped, tag = 'internal scratch']
  #allocation2 [shape = 'f32[4,384]{1,0:T(4,128)}', space=vmem, size = 0x1800, scoped, tag = 'scratch operand']
  %s0 = inlined_call_operand.vmem [shape: f32[2,4,256], index: 0, kind: input, shape index: {}]
  %s1 = inlined_call_operand.vmem [shape: f32[9,4,4], index: 1, kind: input, shape index: {}]
  %s2 = inlined_call_operand.vmem [shape: f32[4,1], index: 2, kind: input, shape index: {}]
  %s3 = inlined_call_operand.vmem [shape: f32[9,4,4], index: 3, kind: input, shape index: {}]
  %s4 = inlined_call_operand.vmem [shape: f32[4,1], index: 4, kind: input, shape index: {}]
  %s5 = inlined_call_operand.vmem [shape: f32[2,4,256], index: 5, kind: output, shape index: {}]
  %s6 = sld [smem:[#allocation0]]
  $region53: #{resnet_block_forward.1} parent=0
    _
  %s8 = ssub.s32 1, %s6
  %s9 = scalar_select 0, %s8, %s6
  loop: start=0, step=1, limit=4
  $region2: #{resnet_block_forward.1} parent=0 // loop_pre_header
    _
  $region3: #{resnet_block_forward.1} parent=0 // loop_header
    %s11 = sphi 0, %s15
    %p12 = scmp.ge.s32.totalorder %s11, 4
    %s21 = sphi 0, %s23
    %s24 = sphi 0, %s21
    %s25 = sphi 0, %s24
    %s41 = sphi 0, %s25
    %s45 = sphi 0, %s45
    %s47 = sphi 0, %s45
    %s48 = sphi 0, %s47
    %s62 = sphi 0, %s48
    %s66 = sphi 0, %s66
    %s68 = sphi 0, %s66
    %s69 = sphi 0, %s68
    %s83 = sphi 0, %s69
    %s87 = sphi 0, %s87
    %s89 = sphi 0, %s87
    %s90 = sphi 0, %s89
    %s104 = sphi 0, %s90
    %s108 = sphi 0, %s108
    %s110 = sphi 0, %s108
    %s111 = sphi 0, %s110
    %s125 = sphi 0, %s111
    %s131 = sphi 0, %s133
    %s134 = sphi 0, %s131
    %s135 = sphi 0, %s134
    %s151 = sphi 0, %s135
  $region4: #{resnet_block_forward.1} parent=0 // loop_header_branch
    %14 = sbr.rel (%p12) target = $region8
  $region5: #{resnet_block_forward.1} parent=0 // loop_body
    %s16 = ssub.s32 %s11, 1
    %s17 = ssub.s32 %s11, 2
    %s18 = sadd.s32 %s11, 1
    %s19 = ssub.s32 %s11, %s18
    %p20 = scmp.eq.s32.totalorder %s19, 0
    %s22 = sadd.s32 %s21, 1
    %s23 = scalar_select %p20, %s21, %s22
    %p26 = pneg %p20
    %p27 = scmp.eq.s32.totalorder %s11, 1
    %p28 = por %p26, %p27
    %p29 = scmp.ne.s32.totalorder %s21, %s24
    %p30 = scmp.eq.s32.totalorder %s11, 0
    %p31 = por %p29, %p30
    %p32 = scmp.ne.s32.totalorder %s21, %s24
    %p33 = scmp.eq.s32.totalorder %s16, 1
    %p34 = por %p32, %p33
    %p35 = scmp.ne.s32.totalorder %s24, %s25
    %p36 = scmp.eq.s32.totalorder %s16, 0
    %p37 = por %p35, %p36
    %p38 = scmp.ne.s32.totalorder %s24, %s25
    %p39 = scmp.eq.s32.totalorder %s17, 1
    %p40 = por %p38, %p39
    %p42 = scmp.ne.s32.totalorder %s25, %s41
    %p43 = scmp.eq.s32.totalorder %s17, 0
    %p44 = por %p42, %p43
    %s46 = sadd.s32 %s45, 1
    %p49 = scmp.eq.s32.totalorder %s11, 1
    %p50 = scmp.ne.s32.totalorder %s45, %s47
    %p51 = scmp.eq.s32.totalorder %s11, 0
    %p52 = por %p50, %p51
    %p53 = scmp.ne.s32.totalorder %s45, %s47
    %p54 = scmp.eq.s32.totalorder %s16, 1
    %p55 = por %p53, %p54
    %p56 = scmp.ne.s32.totalorder %s47, %s48
    %p57 = scmp.eq.s32.totalorder %s16, 0
    %p58 = por %p56, %p57
    %p59 = scmp.ne.s32.totalorder %s47, %s48
    %p60 = scmp.eq.s32.totalorder %s17, 1
    %p61 = por %p59, %p60
    %p63 = scmp.ne.s32.totalorder %s48, %s62
    %p64 = scmp.eq.s32.totalorder %s17, 0
    %p65 = por %p63, %p64
    %s67 = sadd.s32 %s66, 1
    %p70 = scmp.eq.s32.totalorder %s11, 1
    %p71 = scmp.ne.s32.totalorder %s66, %s68
    %p72 = scmp.eq.s32.totalorder %s11, 0
    %p73 = por %p71, %p72
    %p74 = scmp.ne.s32.totalorder %s66, %s68
    %p75 = scmp.eq.s32.totalorder %s16, 1
    %p76 = por %p74, %p75
    %p77 = scmp.ne.s32.totalorder %s68, %s69
    %p78 = scmp.eq.s32.totalorder %s16, 0
    %p79 = por %p77, %p78
    %p80 = scmp.ne.s32.totalorder %s68, %s69
    %p81 = scmp.eq.s32.totalorder %s17, 1
    %p82 = por %p80, %p81
    %p84 = scmp.ne.s32.totalorder %s69, %s83
    %p85 = scmp.eq.s32.totalorder %s17, 0
    %p86 = por %p84, %p85
    %s88 = sadd.s32 %s87, 1
    %p91 = scmp.eq.s32.totalorder %s11, 1
    %p92 = scmp.ne.s32.totalorder %s87, %s89
    %p93 = scmp.eq.s32.totalorder %s11, 0
    %p94 = por %p92, %p93
    %p95 = scmp.ne.s32.totalorder %s87, %s89
    %p96 = scmp.eq.s32.totalorder %s16, 1
    %p97 = por %p95, %p96
    %p98 = scmp.ne.s32.totalorder %s89, %s90
    %p99 = scmp.eq.s32.totalorder %s16, 0
    %p100 = por %p98, %p99
    %p101 = scmp.ne.s32.totalorder %s89, %s90
    %p102 = scmp.eq.s32.totalorder %s17, 1
    %p103 = por %p101, %p102
    %p105 = scmp.ne.s32.totalorder %s90, %s104
    %p106 = scmp.eq.s32.totalorder %s17, 0
    %p107 = por %p105, %p106
    %s109 = sadd.s32 %s108, 1
    %p112 = scmp.eq.s32.totalorder %s11, 1
    %p113 = scmp.ne.s32.totalorder %s108, %s110
    %p114 = scmp.eq.s32.totalorder %s11, 0
    %p115 = por %p113, %p114
    %p116 = scmp.ne.s32.totalorder %s108, %s110
    %p117 = scmp.eq.s32.totalorder %s16, 1
    %p118 = por %p116, %p117
    %p119 = scmp.ne.s32.totalorder %s110, %s111
    %p120 = scmp.eq.s32.totalorder %s16, 0
    %p121 = por %p119, %p120
    %p122 = scmp.ne.s32.totalorder %s110, %s111
    %p123 = scmp.eq.s32.totalorder %s17, 1
    %p124 = por %p122, %p123
    %p126 = scmp.ne.s32.totalorder %s111, %s125
    %p127 = scmp.eq.s32.totalorder %s17, 0
    %p128 = por %p126, %p127
    %s129 = ssub.s32 %s11, %s18
    %p130 = scmp.eq.s32.totalorder %s129, 0
    %s132 = sadd.s32 %s131, 1
    %s133 = scalar_select %p130, %s131, %s132
    %p136 = pneg %p130
    %p137 = scmp.eq.s32.totalorder %s11, 1
    %p138 = por %p136, %p137
    %p139 = scmp.ne.s32.totalorder %s131, %s134
    %p140 = scmp.eq.s32.totalorder %s11, 0
    %p141 = por %p139, %p140
    %p142 = scmp.ne.s32.totalorder %s131, %s134
    %p143 = scmp.eq.s32.totalorder %s16, 1
    %p144 = por %p142, %p143
    %p145 = scmp.ne.s32.totalorder %s134, %s135
    %p146 = scmp.eq.s32.totalorder %s16, 0
    %p147 = por %p145, %p146
    %p148 = scmp.ne.s32.totalorder %s134, %s135
    %p149 = scmp.eq.s32.totalorder %s17, 1
    %p150 = por %p148, %p149
    %p152 = scmp.ne.s32.totalorder %s135, %s151
    %p153 = scmp.eq.s32.totalorder %s17, 0
    %p154 = por %p152, %p153
    %p155 = scmp.le.s32.totalorder 1, %s11
    %p156 = scmp.lt.s32.totalorder %s11, 3
    %p157 = pnand %p155, %p156
    %p158 = pneg %p157
    // Predicated region
    $region9: #{resnet_block_forward.1} parent=5 // pred_check
      _
    $region10: #{resnet_block_forward.1} parent=5 // pred_check_branch
      %160 = sbr.rel (%p157) target = $region12
    $region11: #{resnet_block_forward.1} parent=5 // pred_region
      %s161 = ssub.s32 %s11, 1
      // Predicated region
      $region13: #{resnet_block_forward.1} parent=11 // pred_check
        %p162 = pneg %p58
      $region14: #{resnet_block_forward.1} parent=11 // pred_check_branch
        %164 = sbr.rel (%p162) target = $region16
      $region15: #{resnet_block_forward.1} parent=11 // pred_region
        _
      $region16: #{resnet_block_forward.1} parent=11 // pred_fallthru
        _
      // Predicated region
      $region17: #{resnet_block_forward.1} parent=11 // pred_check
        %p165 = pneg %p79
      $region18: #{resnet_block_forward.1} parent=11 // pred_check_branch
        %167 = sbr.rel (%p165) target = $region20
      $region19: #{resnet_block_forward.1} parent=11 // pred_region
        _
      $region20: #{resnet_block_forward.1} parent=11 // pred_fallthru
        _
      // Predicated region
      $region21: #{resnet_block_forward.1} parent=11 // pred_check
        %p168 = pneg %p100
      $region22: #{resnet_block_forward.1} parent=11 // pred_check_branch
        %170 = sbr.rel (%p168) target = $region24
      $region23: #{resnet_block_forward.1} parent=11 // pred_region
        _
      $region24: #{resnet_block_forward.1} parent=11 // pred_fallthru
        _
      // Predicated region
      $region25: #{resnet_block_forward.1} parent=11 // pred_check
        %p171 = pneg %p121
      $region26: #{resnet_block_forward.1} parent=11 // pred_check_branch
        %173 = sbr.rel (%p171) target = $region28
      $region27: #{resnet_block_forward.1} parent=11 // pred_region
        _
      $region28: #{resnet_block_forward.1} parent=11 // pred_fallthru
        _
    $region12: #{resnet_block_forward.1} parent=5 // pred_fallthru
      _
    %p174 = scmp.lt.s32.totalorder %s11, 2
    // Predicated region
    $region29: #{resnet_block_forward.1} parent=5 // pred_check
      %p175 = pneg %p174
    $region30: #{resnet_block_forward.1} parent=5 // pred_check_branch
      %177 = sbr.rel (%p175) target = $region32
    $region31: #{resnet_block_forward.1} parent=5 // pred_region
      // Predicated region
      $region33: #{resnet_block_forward.1} parent=31 // pred_check
        %p178 = pneg %p31
      $region34: #{resnet_block_forward.1} parent=31 // pred_check_branch
        %180 = sbr.rel (%p178) target = $region36
      $region35: #{resnet_block_forward.1} parent=31 // pred_region
        %p181 = scmp.lt.s32.totalorder %s11, 1
        %s182 = scalar_select %p181, %s11, 1
        %s183 = smul.addr %s182, 2
        %s184 = smul.addr %s183, 4
        %s185 = scalar_lea.vmem %s0, %s184
      $region36: #{resnet_block_forward.1} parent=31 // pred_fallthru
        _
    $region32: #{resnet_block_forward.1} parent=5 // pred_fallthru
      _
    %p186 = scmp.le.s32.totalorder 1, %s11
    %p187 = scmp.lt.s32.totalorder %s11, 3
    %p188 = pnand %p186, %p187
    %p189 = pneg %p188
    // Predicated region
    $region37: #{resnet_block_forward.1} parent=5 // pred_check
      _
    $region38: #{resnet_block_forward.1} parent=5 // pred_check_branch
      %191 = sbr.rel (%p188) target = $region40
    $region39: #{resnet_block_forward.1} parent=5 // pred_region
      %s192 = ssub.s32 %s11, 1
      %p193 = scmp.lt.s32.totalorder %s16, 1
      %s194 = scalar_select %p193, %s16, 1
      %s195 = smul.addr %s194, 2
      %s196 = smul.addr %s195, 4
      %s197 = scalar_lea.vmem %s0, %s196
      %p198 = pneg %p37
      %p199 = pneg %p34
      %p200 = pneg %p58
      %p201 = pneg %p55
      %p202 = pneg %p79
      %p203 = pneg %p76
      %p204 = pneg %p100
      %p205 = pneg %p97
      %p206 = pneg %p121
      %p207 = pneg %p118
      %p208 = pneg %p147
      %p209 = pneg %p144
      %p210 = scmp.lt.s32.totalorder %s16, 1
      %s211 = scalar_select %p210, %s16, 1
      %s212 = smul.addr %s211, 2
      %s213 = smul.addr %s212, 4
      %s214 = scalar_lea.vmem %s5, %s213
      %p215 = scmp.lt.s32.totalorder %s16, 1
      %s216 = scalar_select %p215, %s16, 1
      %s217 = smul.addr %s216, 2
      %s218 = smul.addr %s217, 4
      %s219 = scalar_lea.vmem %s0, %s218
      %p220 = scmp.lt.s32.totalorder %s16, 1
      %s221 = scalar_select %p220, %s16, 1
      %s222 = smul.addr %s221, 2
      %s223 = smul.addr %s222, 4
      %s224 = scalar_lea.vmem %s5, %s223
      %v225 = vlaneseq
      %v226 = vand.u32 %v225, 127
      %v227 = vadd.s32 %v226, 128
      %vm228 = vcmp.lt.s32.totalorder %v226, 0
      %v229 = vsub.s32 0, %v226
      %v230 = vsel %vm228, %v229, %v226
      %v231 = vshrl.u32 %v230, 4
      %v232 = vand.u32 %v230, 15
      %v233 = vsub.s32 0, %v232
      %v234 = vsel %vm228, %v233, %v232
      %vm235 = vcmp.lt.s32.totalorder %v227, 0
      %v236 = vsub.s32 0, %v227
      %v237 = vsel %vm235, %v236, %v227
      %v238 = vshrl.u32 %v237, 4
      %v239 = vand.u32 %v237, 15
      %v240 = vsub.s32 0, %v239
      %v241 = vsel %vm235, %v240, %v239
      %vm242 = vcmp.ne.s32.totalorder %v234, 0
      %vm243 = vcmp.ne.s32.totalorder %v241, 0
      %vm244 = vcmp.lt.s32.totalorder %v234, 0
      %vm245 = vcmp.lt.s32.totalorder %v241, 0
      %vm246 = vmand %vm244, %vm242
      %vm247 = vmand %vm245, %vm243
      %v248 = vadd.s32 %v234, 16
      %v249 = vadd.s32 %v241, 16
      %v250 = vsel %vm246, %v248, %v234
      %v251 = vsel %vm247, %v249, %v241
      %vm252 = vcmp.eq.s32.totalorder %v250, 0
      %vm253 = vcmp.eq.s32.totalorder %v251, 0
      %vm254 = vcmp.eq.s32.totalorder %v250, 15
      %vm255 = vcmp.eq.s32.totalorder %v251, 15
      %v256 = vld [vmem:[%s219] sm:$0xff]
      %258 = vrot.lane.b32.xlu0 %v256, 113
      %v259 = vpop.permute.xlu0 %258
      %vm261 = vcmask 134152
      %262 = vst.msk [vmem:[#allocation2] sm:$0xf] %vm261, %v259
      %263 = vrot.lane.b32.xlu0 %v256, 17
      %v264 = vpop.permute.xlu0 %263
      %v265 = vrot.slane %v264, 4
      %vm266 = vcmask 138240
      %v267 = vsel %vm266, %v265, %v264
      %vm270 = vcmask 1043592
      %vm271 = vcmask 1047556
      %vm272 = vmor %vm271, %vm270
      %273 = vst.msk [vmem:[#allocation2] sm:$0xff] %vm272, %v267
      %vm274 = vcmask 134144
      %275 = vst.msk [vmem:[#allocation2 + $0x8] sm:$0xf] %vm274, %v265
      %276 = vrot.lane.b32.xlu0 %v256, 49
      %v277 = vpop.permute.xlu0 %276
      %v278 = vrot.slane %v277, 4
      %vm280 = vcmask 265352
      %281 = vst.msk [vmem:[#allocation2 + $0x8] sm:$0xf] %vm280, %v278
      %v282 = vld [vmem:[#allocation2] sm:$0xff]
      %v283 = vld [vmem:[#allocation2] sm:$0xff]
      %v284 = vld [vmem:[#allocation2 + $0x8] sm:$0xf]
      %v285 = vsel %vm252, 1, 0
      %v286 = vsel %vm253, 1, 0
      %vm287 = vcmp.eq.s32.totalorder %v285, 1
      %vm288 = vcmp.eq.s32.totalorder %v286, 1
      %v291 = vcombine.high %v283, %v283
      %292 = vrot.lane.b32.xlu0 %v283, 126
      %v293 = vpop.permute.xlu0 %292
      %294 = vrot.lane.b32.xlu0 %v291, 126
      %v295 = vpop.permute.xlu0 %294
      %296 = vrot.lane.b32.xlu0 %v284, 126
      %v297 = vpop.permute.xlu0 %296
      %vm298 = vcmask 1031168
      %v299 = vsel %vm298, %v293, %v295
      %v300 = vsel %vm298, %v295, %v297
      %v304 = vcombine.high %v282, %v282
      %v306 = vsel %vm287, %v299, %v282
      %v307 = vsel %vm288, %v300, %v304
      %v308 = vsel %vm254, 1, 0
      %v309 = vsel %vm255, 1, 0
      %vm310 = vcmp.eq.s32.totalorder %v308, 1
      %vm311 = vcmp.eq.s32.totalorder %v309, 1
      %v312 = vsel %vm310, %v282, %v299
      %v313 = vsel %vm311, %v304, %v300
      %v314 = vld [vmem:[%s1] sm:$0xf]
      %s315 = scalar_lea.vmem %s1, 4
      %v316 = vld [vmem:[%s315] sm:$0xf]
      %317 = vrot.lane.b32.xlu0 %v283, 127
      %v318 = vpop.permute.xlu0 %317
      %319 = vrot.lane.b32.xlu0 %v291, 127
      %v320 = vpop.permute.xlu0 %319
      %321 = vrot.lane.b32.xlu0 %v284, 127
      %v322 = vpop.permute.xlu0 %321
      %vm323 = vcmask 1039360
      %v324 = vsel %vm323, %v318, %v320
      %v325 = vsel %vm323, %v320, %v322
      %vm326 = vcmask 31744
      %v328 = vsel %vm326, %v316, 0
      %vm330 = vcmask 1043456
      %v331 = vsel %vm330, %v324, 0
      %v333 = vsel %vm330, %v325, 0
      %335 = vmatprep.subr.mxu0 %v333
      %336 = vmatpush1.msra.mxu0 %v331
      %337 = vmatprep.subr.mxu0 0.0
      %338 = vmatpush1.msra.mxu0 0.0
      %339 = vmatprep.subr.mxu0 0.0
      %340 = vmatpush1.msra.mxu0 0.0
      %341 = vmatprep.subr.mxu0 0.0
      %342 = vmatpush1.msra.mxu0 0.0
      %343 = vmatprep.subr.mxu0 0.0
      %344 = vmatpush1.msra.mxu0 0.0
      %345 = vmatprep.subr.mxu0 0.0
      %346 = vmatpush1.msra.mxu0 0.0
      %347 = vmatprep.subr.mxu0 0.0
      %348 = vmatpush1.msra.mxu0 0.0
      %349 = vmatprep.subr.mxu0 0.0
      %350 = vmatpush1.msra.mxu0 0.0
      %351 = vmatprep.subr.mxu0 0.0
      %352 = vmatpush1.msra.mxu0 0.0
      %353 = vmatprep.subr.mxu0 0.0
      %354 = vmatpush1.msra.mxu0 0.0
      %355 = vmatprep.subr.mxu0 0.0
      %356 = vmatpush1.msra.mxu0 0.0
      %357 = vmatprep.subr.mxu0 0.0
      %358 = vmatpush1.msra.mxu0 0.0
      %359 = vmatprep.subr.mxu0 0.0
      %360 = vmatpush1.msra.mxu0 0.0
      %361 = vmatprep.subr.mxu0 0.0
      %362 = vmatpush1.msra.mxu0 0.0
      %363 = vmatprep.subr.mxu0 0.0
      %364 = vmatpush1.msra.mxu0 0.0
      %365 = vmatprep.subr.mxu0 0.0
      %366 = vmatpush1.msra.mxu0 0.0
      %367 = vmatprep.subr.mxu0 0.0
      %368 = vmatpush1.msra.mxu0 0.0
      %369 = vmatprep.subr.mxu0 0.0
      %370 = vmatpush1.msra.mxu0 0.0
      %371 = vmatprep.subr.mxu0 0.0
      %372 = vmatpush1.msra.mxu0 0.0
      %373 = vmatprep.subr.mxu0 0.0
      %374 = vmatpush1.msra.mxu0 0.0
      %375 = vmatprep.subr.mxu0 0.0
      %376 = vmatpush1.msra.mxu0 0.0
      %377 = vmatprep.subr.mxu0 0.0
      %378 = vmatpush1.msra.mxu0 0.0
      %379 = vmatprep.subr.mxu0 0.0
      %380 = vmatpush1.msra.mxu0 0.0
      %381 = vmatprep.subr.mxu0 0.0
      %382 = vmatpush1.msra.mxu0 0.0
      %383 = vmatprep.subr.mxu0 0.0
      %384 = vmatpush1.msra.mxu0 0.0
      %385 = vmatprep.subr.mxu0 0.0
      %386 = vmatpush1.msra.mxu0 0.0
      %387 = vmatprep.subr.mxu0 0.0
      %388 = vmatpush1.msra.mxu0 0.0
      %389 = vmatprep.subr.mxu0 0.0
      %390 = vmatpush1.msra.mxu0 0.0
      %391 = vmatprep.subr.mxu0 0.0
      %392 = vmatpush1.msra.mxu0 0.0
      %393 = vmatprep.subr.mxu0 0.0
      %394 = vmatpush1.msra.mxu0 0.0
      %395 = vmatprep.subr.mxu0 0.0
      %396 = vmatpush1.msra.mxu0 0.0
      %397 = vmatprep.subr.mxu0 0.0
      %398 = vmatpush1.msra.mxu0 0.0
      %399 = vmatprep.mubr.f32.mxu0 0.0
      %400 = vmatmul.mubr.f32.gmra.mrb[0].mxu0 %v328
      %v401 = vpop.f32.mrb[0].mxu0
      %v402 = vadd.f32 0.0, %v401
      %v403 = vpop.f32.mrb[0].mxu0
      %v404 = vadd.f32 0.0, %v403
      %405 = vdwg.mxu0
      %v407 = vsel %vm326, %v314, 0
      %v410 = vsel %vm330, %v306, 0
      %v413 = vsel %vm330, %v307, 0
      %415 = vmatprep.subr.mxu0 %v413
      %416 = vmatpush1.msra.mxu0 %v410
      %417 = vmatprep.subr.mxu0 0.0
      %418 = vmatpush1.msra.mxu0 0.0
      %419 = vmatprep.subr.mxu0 0.0
      %420 = vmatpush1.msra.mxu0 0.0
      %421 = vmatprep.subr.mxu0 0.0
      %422 = vmatpush1.msra.mxu0 0.0
      %423 = vmatprep.subr.mxu0 0.0
      %424 = vmatpush1.msra.mxu0 0.0
      %425 = vmatprep.subr.mxu0 0.0
      %426 = vmatpush1.msra.mxu0 0.0
      %427 = vmatprep.subr.mxu0 0.0
      %428 = vmatpush1.msra.mxu0 0.0
      %429 = vmatprep.subr.mxu0 0.0
      %430 = vmatpush1.msra.mxu0 0.0
      %431 = vmatprep.subr.mxu0 0.0
      %432 = vmatpush1.msra.mxu0 0.0
      %433 = vmatprep.subr.mxu0 0.0
      %434 = vmatpush1.msra.mxu0 0.0
      %435 = vmatprep.subr.mxu0 0.0
      %436 = vmatpush1.msra.mxu0 0.0
      %437 = vmatprep.subr.mxu0 0.0
      %438 = vmatpush1.msra.mxu0 0.0
      %439 = vmatprep.subr.mxu0 0.0
      %440 = vmatpush1.msra.mxu0 0.0
      %441 = vmatprep.subr.mxu0 0.0
      %442 = vmatpush1.msra.mxu0 0.0
      %443 = vmatprep.subr.mxu0 0.0
      %444 = vmatpush1.msra.mxu0 0.0
      %445 = vmatprep.subr.mxu0 0.0
      %446 = vmatpush1.msra.mxu0 0.0
      %447 = vmatprep.subr.mxu0 0.0
      %448 = vmatpush1.msra.mxu0 0.0
      %449 = vmatprep.subr.mxu0 0.0
      %450 = vmatpush1.msra.mxu0 0.0
      %451 = vmatprep.subr.mxu0 0.0
      %452 = vmatpush1.msra.mxu0 0.0
      %453 = vmatprep.subr.mxu0 0.0
      %454 = vmatpush1.msra.mxu0 0.0
      %455 = vmatprep.subr.mxu0 0.0
      %456 = vmatpush1.msra.mxu0 0.0
      %457 = vmatprep.subr.mxu0 0.0
      %458 = vmatpush1.msra.mxu0 0.0
      %459 = vmatprep.subr.mxu0 0.0
      %460 = vmatpush1.msra.mxu0 0.0
      %461 = vmatprep.subr.mxu0 0.0
      %462 = vmatpush1.msra.mxu0 0.0
      %463 = vmatprep.subr.mxu0 0.0
      %464 = vmatpush1.msra.mxu0 0.0
      %465 = vmatprep.subr.mxu0 0.0
      %466 = vmatpush1.msra.mxu0 0.0
      %467 = vmatprep.subr.mxu0 0.0
      %468 = vmatpush1.msra.mxu0 0.0
      %469 = vmatprep.subr.mxu0 0.0
      %470 = vmatpush1.msra.mxu0 0.0
      %471 = vmatprep.subr.mxu0 0.0
      %472 = vmatpush1.msra.mxu0 0.0
      %473 = vmatprep.subr.mxu0 0.0
      %474 = vmatpush1.msra.mxu0 0.0
      %475 = vmatprep.subr.mxu0 0.0
      %476 = vmatpush1.msra.mxu0 0.0
      %477 = vmatprep.subr.mxu0 0.0
      %478 = vmatpush1.msra.mxu0 0.0
      %479 = vmatprep.mubr.f32.mxu0 0.0
      %480 = vmatmul.mubr.f32.gmra.mrb[0].mxu0 %v407
      %v481 = vpop.f32.mrb[0].mxu0
      %v482 = vadd.f32 %v402, %v481
      %v483 = vpop.f32.mrb[0].mxu0
      %v484 = vadd.f32 %v404, %v483
      %485 = vdwg.mxu0
      %s486 = scalar_lea.vmem %s1, 8
      %v487 = vld [vmem:[%s486] sm:$0xf]
      %v489 = vsel %vm326, %v487, 0
      %v492 = vsel %vm330, %v312, 0
      %v495 = vsel %vm330, %v313, 0
      %497 = vmatprep.subr.mxu0 %v495
      %498 = vmatpush1.msra.mxu0 %v492
      %499 = vmatprep.subr.mxu0 0.0
      %500 = vmatpush1.msra.mxu0 0.0
      %501 = vmatprep.subr.mxu0 0.0
      %502 = vmatpush1.msra.mxu0 0.0
      %503 = vmatprep.subr.mxu0 0.0
      %504 = vmatpush1.msra.mxu0 0.0
      %505 = vmatprep.subr.mxu0 0.0
      %506 = vmatpush1.msra.mxu0 0.0
      %507 = vmatprep.subr.mxu0 0.0
      %508 = vmatpush1.msra.mxu0 0.0
      %509 = vmatprep.subr.mxu0 0.0
      %510 = vmatpush1.msra.mxu0 0.0
      %511 = vmatprep.subr.mxu0 0.0
      %512 = vmatpush1.msra.mxu0 0.0
      %513 = vmatprep.subr.mxu0 0.0
      %514 = vmatpush1.msra.mxu0 0.0
      %515 = vmatprep.subr.mxu0 0.0
      %516 = vmatpush1.msra.mxu0 0.0
      %517 = vmatprep.subr.mxu0 0.0
      %518 = vmatpush1.msra.mxu0 0.0
      %519 = vmatprep.subr.mxu0 0.0
      %520 = vmatpush1.msra.mxu0 0.0
      %521 = vmatprep.subr.mxu0 0.0
      %522 = vmatpush1.msra.mxu0 0.0
      %523 = vmatprep.subr.mxu0 0.0
      %524 = vmatpush1.msra.mxu0 0.0
      %525 = vmatprep.subr.mxu0 0.0
      %526 = vmatpush1.msra.mxu0 0.0
      %527 = vmatprep.subr.mxu0 0.0
      %528 = vmatpush1.msra.mxu0 0.0
      %529 = vmatprep.subr.mxu0 0.0
      %530 = vmatpush1.msra.mxu0 0.0
      %531 = vmatprep.subr.mxu0 0.0
      %532 = vmatpush1.msra.mxu0 0.0
      %533 = vmatprep.subr.mxu0 0.0
      %534 = vmatpush1.msra.mxu0 0.0
      %535 = vmatprep.subr.mxu0 0.0
      %536 = vmatpush1.msra.mxu0 0.0
      %537 = vmatprep.subr.mxu0 0.0
      %538 = vmatpush1.msra.mxu0 0.0
      %539 = vmatprep.subr.mxu0 0.0
      %540 = vmatpush1.msra.mxu0 0.0
      %541 = vmatprep.subr.mxu0 0.0
      %542 = vmatpush1.msra.mxu0 0.0
      %543 = vmatprep.subr.mxu0 0.0
      %544 = vmatpush1.msra.mxu0 0.0
      %545 = vmatprep.subr.mxu0 0.0
      %546 = vmatpush1.msra.mxu0 0.0
      %547 = vmatprep.subr.mxu0 0.0
      %548 = vmatpush1.msra.mxu0 0.0
      %549 = vmatprep.subr.mxu0 0.0
      %550 = vmatpush1.msra.mxu0 0.0
      %551 = vmatprep.subr.mxu0 0.0
      %552 = vmatpush1.msra.mxu0 0.0
      %553 = vmatprep.subr.mxu0 0.0
      %554 = vmatpush1.msra.mxu0 0.0
      %555 = vmatprep.subr.mxu0 0.0
      %556 = vmatpush1.msra.mxu0 0.0
      %557 = vmatprep.subr.mxu0 0.0
      %558 = vmatpush1.msra.mxu0 0.0
      %559 = vmatprep.subr.mxu0 0.0
      %560 = vmatpush1.msra.mxu0 0.0
      %561 = vmatprep.mubr.f32.mxu0 0.0
      %562 = vmatmul.mubr.f32.gmra.mrb[0].mxu0 %v489
      %v563 = vpop.f32.mrb[0].mxu0
      %v564 = vadd.f32 0.0, %v563
      %v565 = vpop.f32.mrb[0].mxu0
      %v566 = vadd.f32 0.0, %v565
      %567 = vdwg.mxu0
      %v568 = vadd.f32 %v482, %v564
      %v569 = vadd.f32 %v484, %v566
      %v570 = vld [vmem:[#allocation2] sm:$0xff]
      %v571 = vld [vmem:[#allocation2 + $0x8] sm:$0xf]
      %v574 = vcombine.high %v570, %v570
      %575 = vrot.lane.b32.xlu0 %v570, 110
      %v576 = vpop.permute.xlu0 %575
      %577 = vrot.lane.b32.xlu0 %v574, 110
      %v578 = vpop.permute.xlu0 %577
      %579 = vrot.lane.b32.xlu0 %v571, 110
      %v580 = vpop.permute.xlu0 %579
      %vm581 = vcmask 900096
      %v582 = vsel %vm581, %v576, %v578
      %v583 = vsel %vm581, %v578, %v580
      %586 = vrot.lane.b32.xlu0 %v570, 112
      %v587 = vpop.permute.xlu0 %586
      %588 = vrot.lane.b32.xlu0 %v574, 112
      %v589 = vpop.permute.xlu0 %588
      %590 = vrot.lane.b32.xlu0 %v571, 112
      %v591 = vpop.permute.xlu0 %590
      %vm592 = vcmask 916480
      %v593 = vsel %vm592, %v587, %v589
      %v594 = vsel %vm592, %v589, %v591
      %v597 = vsel %vm287, %v582, %v593
      %v598 = vsel %vm288, %v583, %v594
      %v599 = vsel %vm310, %v593, %v582
      %v600 = vsel %vm311, %v594, %v583
      %s601 = scalar_lea.vmem %s1, 12
      %v602 = vld [vmem:[%s601] sm:$0xf]
      %v604 = vsel %vm326, %v602, 0
      %v607 = vsel %vm330, %v597, 0
      %v610 = vsel %vm330, %v598, 0
      %612 = vmatprep.subr.mxu0 %v610
      %613 = vmatpush1.msra.mxu0 %v607
      %614 = vmatprep.subr.mxu0 0.0
      %615 = vmatpush1.msra.mxu0 0.0
      %616 = vmatprep.subr.mxu0 0.0
      %617 = vmatpush1.msra.mxu0 0.0
      %618 = vmatprep.subr.mxu0 0.0
      %619 = vmatpush1.msra.mxu0 0.0
      %620 = vmatprep.subr.mxu0 0.0
      %621 = vmatpush1.msra.mxu0 0.0
      %622 = vmatprep.subr.mxu0 0.0
      %623 = vmatpush1.msra.mxu0 0.0
      %624 = vmatprep.subr.mxu0 0.0
      %625 = vmatpush1.msra.mxu0 0.0
      %626 = vmatprep.subr.mxu0 0.0
      %627 = vmatpush1.msra.mxu0 0.0
      %628 = vmatprep.subr.mxu0 0.0
      %629 = vmatpush1.msra.mxu0 0.0
      %630 = vmatprep.subr.mxu0 0.0
      %631 = vmatpush1.msra.mxu0 0.0
      %632 = vmatprep.subr.mxu0 0.0
      %633 = vmatpush1.msra.mxu0 0.0
      %634 = vmatprep.subr.mxu0 0.0
      %635 = vmatpush1.msra.mxu0 0.0
      %636 = vmatprep.subr.mxu0 0.0
      %637 = vmatpush1.msra.mxu0 0.0
      %638 = vmatprep.subr.mxu0 0.0
      %639 = vmatpush1.msra.mxu0 0.0
      %640 = vmatprep.subr.mxu0 0.0
      %641 = vmatpush1.msra.mxu0 0.0
      %642 = vmatprep.subr.mxu0 0.0
      %643 = vmatpush1.msra.mxu0 0.0
      %644 = vmatprep.subr.mxu0 0.0
      %645 = vmatpush1.msra.mxu0 0.0
      %646 = vmatprep.subr.mxu0 0.0
      %647 = vmatpush1.msra.mxu0 0.0
      %648 = vmatprep.subr.mxu0 0.0
      %649 = vmatpush1.msra.mxu0 0.0
      %650 = vmatprep.subr.mxu0 0.0
      %651 = vmatpush1.msra.mxu0 0.0
      %652 = vmatprep.subr.mxu0 0.0
      %653 = vmatpush1.msra.mxu0 0.0
      %654 = vmatprep.subr.mxu0 0.0
      %655 = vmatpush1.msra.mxu0 0.0
      %656 = vmatprep.subr.mxu0 0.0
      %657 = vmatpush1.msra.mxu0 0.0
      %658 = vmatprep.subr.mxu0 0.0
      %659 = vmatpush1.msra.mxu0 0.0
      %660 = vmatprep.subr.mxu0 0.0
      %661 = vmatpush1.msra.mxu0 0.0
      %662 = vmatprep.subr.mxu0 0.0
      %663 = vmatpush1.msra.mxu0 0.0
      %664 = vmatprep.subr.mxu0 0.0
      %665 = vmatpush1.msra.mxu0 0.0
      %666 = vmatprep.subr.mxu0 0.0
      %667 = vmatpush1.msra.mxu0 0.0
      %668 = vmatprep.subr.mxu0 0.0
      %669 = vmatpush1.msra.mxu0 0.0
      %670 = vmatprep.subr.mxu0 0.0
      %671 = vmatpush1.msra.mxu0 0.0
      %672 = vmatprep.subr.mxu0 0.0
      %673 = vmatpush1.msra.mxu0 0.0
      %674 = vmatprep.subr.mxu0 0.0
      %675 = vmatpush1.msra.mxu0 0.0
      %676 = vmatprep.mubr.f32.mxu0 0.0
      %677 = vmatmul.mubr.f32.gmra.mrb[0].mxu0 %v604
      %v678 = vpop.f32.mrb[0].mxu0
      %v679 = vadd.f32 0.0, %v678
      %v680 = vpop.f32.mrb[0].mxu0
      %v681 = vadd.f32 0.0, %v680
      %682 = vdwg.mxu0
      %v683 = vadd.f32 %v568, %v679
      %v684 = vadd.f32 %v569, %v681
      %s685 = scalar_lea.vmem %s1, 16
      %v686 = vld [vmem:[%s685] sm:$0xf]
      %687 = vrot.lane.b32.xlu0 %v570, 111
      %v688 = vpop.permute.xlu0 %687
      %689 = vrot.lane.b32.xlu0 %v574, 111
      %v690 = vpop.permute.xlu0 %689
      %691 = vrot.lane.b32.xlu0 %v571, 111
      %v692 = vpop.permute.xlu0 %691
      %vm693 = vcmask 908288
      %v694 = vsel %vm693, %v688, %v690
      %v695 = vsel %vm693, %v690, %v692
      %v697 = vsel %vm326, %v686, 0
      %v699 = vsel %vm330, %v694, 0
      %v701 = vsel %vm330, %v695, 0
      %703 = vmatprep.subr.mxu0 %v701
      %704 = vmatpush1.msra.mxu0 %v699
      %705 = vmatprep.subr.mxu0 0.0
      %706 = vmatpush1.msra.mxu0 0.0
      %707 = vmatprep.subr.mxu0 0.0
      %708 = vmatpush1.msra.mxu0 0.0
      %709 = vmatprep.subr.mxu0 0.0
      %710 = vmatpush1.msra.mxu0 0.0
      %711 = vmatprep.subr.mxu0 0.0
      %712 = vmatpush1.msra.mxu0 0.0
      %713 = vmatprep.subr.mxu0 0.0
      %714 = vmatpush1.msra.mxu0 0.0
      %715 = vmatprep.subr.mxu0 0.0
      %716 = vmatpush1.msra.mxu0 0.0
      %717 = vmatprep.subr.mxu0 0.0
      %718 = vmatpush1.msra.mxu0 0.0
      %719 = vmatprep.subr.mxu0 0.0
      %720 = vmatpush1.msra.mxu0 0.0
      %721 = vmatprep.subr.mxu0 0.0
      %722 = vmatpush1.msra.mxu0 0.0
      %723 = vmatprep.subr.mxu0 0.0
      %724 = vmatpush1.msra.mxu0 0.0
      %725 = vmatprep.subr.mxu0 0.0
      %726 = vmatpush1.msra.mxu0 0.0
      %727 = vmatprep.subr.mxu0 0.0
      %728 = vmatpush1.msra.mxu0 0.0
      %729 = vmatprep.subr.mxu0 0.0
      %730 = vmatpush1.msra.mxu0 0.0
      %731 = vmatprep.subr.mxu0 0.0
      %732 = vmatpush1.msra.mxu0 0.0
      %733 = vmatprep.subr.mxu0 0.0
      %734 = vmatpush1.msra.mxu0 0.0
      %735 = vmatprep.subr.mxu0 0.0
      %736 = vmatpush1.msra.mxu0 0.0
      %737 = vmatprep.subr.mxu0 0.0
      %738 = vmatpush1.msra.mxu0 0.0
      %739 = vmatprep.subr.mxu0 0.0
      %740 = vmatpush1.msra.mxu0 0.0
      %741 = vmatprep.subr.mxu0 0.0
      %742 = vmatpush1.msra.mxu0 0.0
      %743 = vmatprep.subr.mxu0 0.0
      %744 = vmatpush1.msra.mxu0 0.0
      %745 = vmatprep.subr.mxu0 0.0
      %746 = vmatpush1.msra.mxu0 0.0
      %747 = vmatprep.subr.mxu0 0.0
      %748 = vmatpush1.msra.mxu0 0.0
      %749 = vmatprep.subr.mxu0 0.0
      %750 = vmatpush1.msra.mxu0 0.0
      %751 = vmatprep.subr.mxu0 0.0
      %752 = vmatpush1.msra.mxu0 0.0
      %753 = vmatprep.subr.mxu0 0.0
      %754 = vmatpush1.msra.mxu0 0.0
      %755 = vmatprep.subr.mxu0 0.0
      %756 = vmatpush1.msra.mxu0 0.0
      %757 = vmatprep.subr.mxu0 0.0
      %758 = vmatpush1.msra.mxu0 0.0
      %759 = vmatprep.subr.mxu0 0.0
      %760 = vmatpush1.msra.mxu0 0.0
      %761 = vmatprep.subr.mxu0 0.0
      %762 = vmatpush1.msra.mxu0 0.0
      %763 = vmatprep.subr.mxu0 0.0
      %764 = vmatpush1.msra.mxu0 0.0
      %765 = vmatprep.subr.mxu0 0.0
      %766 = vmatpush1.msra.mxu0 0.0
      %767 = vmatprep.mubr.f32.mxu0 0.0
      %768 = vmatmul.mubr.f32.gmra.mrb[0].mxu0 %v697
      %v769 = vpop.f32.mrb[0].mxu0
      %v770 = vadd.f32 0.0, %v769
      %v771 = vpop.f32.mrb[0].mxu0
      %v772 = vadd.f32 0.0, %v771
      %773 = vdwg.mxu0
      %v774 = vadd.f32 %v683, %v770
      %v775 = vadd.f32 %v684, %v772
      %s776 = scalar_lea.vmem %s1, 20
      %v777 = vld [vmem:[%s776] sm:$0xf]
      %v779 = vsel %vm326, %v777, 0
      %v782 = vsel %vm330, %v599, 0
      %v785 = vsel %vm330, %v600, 0
      %787 = vmatprep.subr.mxu0 %v785
      %788 = vmatpush1.msra.mxu0 %v782
      %789 = vmatprep.subr.mxu0 0.0
      %790 = vmatpush1.msra.mxu0 0.0
      %791 = vmatprep.subr.mxu0 0.0
      %792 = vmatpush1.msra.mxu0 0.0
      %793 = vmatprep.subr.mxu0 0.0
      %794 = vmatpush1.msra.mxu0 0.0
      %795 = vmatprep.subr.mxu0 0.0
      %796 = vmatpush1.msra.mxu0 0.0
      %797 = vmatprep.subr.mxu0 0.0
      %798 = vmatpush1.msra.mxu0 0.0
      %799 = vmatprep.subr.mxu0 0.0
      %800 = vmatpush1.msra.mxu0 0.0
      %801 = vmatprep.subr.mxu0 0.0
      %802 = vmatpush1.msra.mxu0 0.0
      %803 = vmatprep.subr.mxu0 0.0
      %804 = vmatpush1.msra.mxu0 0.0
      %805 = vmatprep.subr.mxu0 0.0
      %806 = vmatpush1.msra.mxu0 0.0
      %807 = vmatprep.subr.mxu0 0.0
      %808 = vmatpush1.msra.mxu0 0.0
      %809 = vmatprep.subr.mxu0 0.0
      %810 = vmatpush1.msra.mxu0 0.0
      %811 = vmatprep.subr.mxu0 0.0
      %812 = vmatpush1.msra.mxu0 0.0
      %813 = vmatprep.subr.mxu0 0.0
      %814 = vmatpush1.msra.mxu0 0.0
      %815 = vmatprep.subr.mxu0 0.0
      %816 = vmatpush1.msra.mxu0 0.0
      %817 = vmatprep.subr.mxu0 0.0
      %818 = vmatpush1.msra.mxu0 0.0
      %819 = vmatprep.subr.mxu0 0.0
      %820 = vmatpush1.msra.mxu0 0.0
      %821 = vmatprep.subr.mxu0 0.0
      %822 = vmatpush1.msra.mxu0 0.0
      %823 = vmatprep.subr.mxu0 0.0
      %824 = vmatpush1.msra.mxu0 0.0
      %825 = vmatprep.subr.mxu0 0.0
      %826 = vmatpush1.msra.mxu0 0.0
      %827 = vmatprep.subr.mxu0 0.0
      %828 = vmatpush1.msra.mxu0 0.0
      %829 = vmatprep.subr.mxu0 0.0
      %830 = vmatpush1.msra.mxu0 0.0
      %831 = vmatprep.subr.mxu0 0.0
      %832 = vmatpush1.msra.mxu0 0.0
      %833 = vmatprep.subr.mxu0 0.0
      %834 = vmatpush1.msra.mxu0 0.0
      %835 = vmatprep.subr.mxu0 0.0
      %836 = vmatpush1.msra.mxu0 0.0
      %837 = vmatprep.subr.mxu0 0.0
      %838 = vmatpush1.msra.mxu0 0.0
      %839 = vmatprep.subr.mxu0 0.0
      %840 = vmatpush1.msra.mxu0 0.0
      %841 = vmatprep.subr.mxu0 0.0
      %842 = vmatpush1.msra.mxu0 0.0
      %843 = vmatprep.subr.mxu0 0.0
      %844 = vmatpush1.msra.mxu0 0.0
      %845 = vmatprep.subr.mxu0 0.0
      %846 = vmatpush1.msra.mxu0 0.0
      %847 = vmatprep.subr.mxu0 0.0
      %848 = vmatpush1.msra.mxu0 0.0
      %849 = vmatprep.subr.mxu0 0.0
      %850 = vmatpush1.msra.mxu0 0.0
      %851 = vmatprep.mubr.f32.mxu0 0.0
      %852 = vmatmul.mubr.f32.gmra.mrb[0].mxu0 %v779
      %v853 = vpop.f32.mrb[0].mxu0
      %v854 = vadd.f32 0.0, %v853
      %v855 = vpop.f32.mrb[0].mxu0
      %v856 = vadd.f32 0.0, %v855
      %857 = vdwg.mxu0
      %v858 = vadd.f32 %v774, %v854
      %v859 = vadd.f32 %v775, %v856
      %v860 = vld [vmem:[#allocation2] sm:$0xff]
      %v861 = vld [vmem:[#allocation2 + $0x8] sm:$0xf]
      %v864 = vcombine.high %v860, %v860
      %865 = vrot.lane.b32.xlu0 %v860, 94
      %v866 = vpop.permute.xlu0 %865
      %867 = vrot.lane.b32.xlu0 %v864, 94
      %v868 = vpop.permute.xlu0 %867
      %869 = vrot.lane.b32.xlu0 %v861, 94
      %v870 = vpop.permute.xlu0 %869
      %vm871 = vcmask 769024
      %v872 = vsel %vm871, %v866, %v868
      %v873 = vsel %vm871, %v868, %v870
      %876 = vrot.lane.b32.xlu0 %v860, 96
      %v877 = vpop.permute.xlu0 %876
      %878 = vrot.lane.b32.xlu0 %v864, 96
      %v879 = vpop.permute.xlu0 %878
      %880 = vrot.lane.b32.xlu0 %v861, 96
      %v881 = vpop.permute.xlu0 %880
      %vm882 = vcmask 785408
      %v883 = vsel %vm882, %v877, %v879
      %v884 = vsel %vm882, %v879, %v881
      %v887 = vsel %vm287, %v872, %v883
      %v888 = vsel %vm288, %v873, %v884
      %v889 = vsel %vm310, %v883, %v872
      %v890 = vsel %vm311, %v884, %v873
      %s891 = scalar_lea.vmem %s1, 24
      %v892 = vld [vmem:[%s891] sm:$0xf]
      %v894 = vsel %vm326, %v892, 0
      %v897 = vsel %vm330, %v887, 0
      %v900 = vsel %vm330, %v888, 0
      %902 = vmatprep.subr.mxu0 %v900
      %903 = vmatpush1.msra.mxu0 %v897
      %904 = vmatprep.subr.mxu0 0.0
      %905 = vmatpush1.msra.mxu0 0.0
      %906 = vmatprep.subr.mxu0 0.0
      %907 = vmatpush1.msra.mxu0 0.0
      %908 = vmatprep.subr.mxu0 0.0
      %909 = vmatpush1.msra.mxu0 0.0
      %910 = vmatprep.subr.mxu0 0.0
      %911 = vmatpush1.msra.mxu0 0.0
      %912 = vmatprep.subr.mxu0 0.0
      %913 = vmatpush1.msra.mxu0 0.0
      %914 = vmatprep.subr.mxu0 0.0
      %915 = vmatpush1.msra.mxu0 0.0
      %916 = vmatprep.subr.mxu0 0.0
      %917 = vmatpush1.msra.mxu0 0.0
      %918 = vmatprep.subr.mxu0 0.0
      %919 = vmatpush1.msra.mxu0 0.0
      %920 = vmatprep.subr.mxu0 0.0
      %921 = vmatpush1.msra.mxu0 0.0
      %922 = vmatprep.subr.mxu0 0.0
      %923 = vmatpush1.msra.mxu0 0.0
      %924 = vmatprep.subr.mxu0 0.0
      %925 = vmatpush1.msra.mxu0 0.0
      %926 = vmatprep.subr.mxu0 0.0
      %927 = vmatpush1.msra.mxu0 0.0
      %928 = vmatprep.subr.mxu0 0.0
      %929 = vmatpush1.msra.mxu0 0.0
      %930 = vmatprep.subr.mxu0 0.0
      %931 = vmatpush1.msra.mxu0 0.0
      %932 = vmatprep.subr.mxu0 0.0
      %933 = vmatpush1.msra.mxu0 0.0
      %934 = vmatprep.subr.mxu0 0.0
      %935 = vmatpush1.msra.mxu0 0.0
      %936 = vmatprep.subr.mxu0 0.0
      %937 = vmatpush1.msra.mxu0 0.0
      %938 = vmatprep.subr.mxu0 0.0
      %939 = vmatpush1.msra.mxu0 0.0
      %940 = vmatprep.subr.mxu0 0.0
      %941 = vmatpush1.msra.mxu0 0.0
      %942 = vmatprep.subr.mxu0 0.0
      %943 = vmatpush1.msra.mxu0 0.0
      %944 = vmatprep.subr.mxu0 0.0
      %945 = vmatpush1.msra.mxu0 0.0
      %946 = vmatprep.subr.mxu0 0.0
      %947 = vmatpush1.msra.mxu0 0.0
      %948 = vmatprep.subr.mxu0 0.0
      %949 = vmatpush1.msra.mxu0 0.0
      %950 = vmatprep.subr.mxu0 0.0
      %951 = vmatpush1.msra.mxu0 0.0
      %952 = vmatprep.subr.mxu0 0.0
      %953 = vmatpush1.msra.mxu0 0.0
      %954 = vmatprep.subr.mxu0 0.0
      %955 = vmatpush1.msra.mxu0 0.0
      %956 = vmatprep.subr.mxu0 0.0
      %957 = vmatpush1.msra.mxu0 0.0
      %958 = vmatprep.subr.mxu0 0.0
      %959 = vmatpush1.msra.mxu0 0.0
      %960 = vmatprep.subr.mxu0 0.0
      %961 = vmatpush1.msra.mxu0 0.0
      %962 = vmatprep.subr.mxu0 0.0
      %963 = vmatpush1.msra.mxu0 0.0
      %964 = vmatprep.subr.mxu0 0.0
      %965 = vmatpush1.msra.mxu0 0.0
      %966 = vmatprep.mubr.f32.mxu0 0.0
      %967 = vmatmul.mubr.f32.gmra.mrb[0].mxu0 %v894
      %v968 = vpop.f32.mrb[0].mxu0
      %v969 = vadd.f32 0.0, %v968
      %v970 = vpop.f32.mrb[0].mxu0
      %v971 = vadd.f32 0.0, %v970
      %972 = vdwg.mxu0
      %v973 = vadd.f32 %v858, %v969
      %v974 = vadd.f32 %v859, %v971
      %s975 = scalar_lea.vmem %s1, 28
      %v976 = vld [vmem:[%s975] sm:$0xf]
      %977 = vrot.lane.b32.xlu0 %v860, 95
      %v978 = vpop.permute.xlu0 %977
      %979 = vrot.lane.b32.xlu0 %v864, 95
      %v980 = vpop.permute.xlu0 %979
      %981 = vrot.lane.b32.xlu0 %v861, 95
      %v982 = vpop.permute.xlu0 %981
      %vm983 = vcmask 777216
      %v984 = vsel %vm983, %v978, %v980
      %v985 = vsel %vm983, %v980, %v982
      %v987 = vsel %vm326, %v976, 0
      %v989 = vsel %vm330, %v984, 0
      %v991 = vsel %vm330, %v985, 0
      %993 = vmatprep.subr.mxu0 %v991
      %994 = vmatpush1.msra.mxu0 %v989
      %995 = vmatprep.subr.mxu0 0.0
      %996 = vmatpush1.msra.mxu0 0.0
      %997 = vmatprep.subr.mxu0 0.0
      %998 = vmatpush1.msra.mxu0 0.0
      %999 = vmatprep.subr.mxu0 0.0
      %1000 = vmatpush1.msra.mxu0 0.0
      %1001 = vmatprep.subr.mxu0 0.0
      %1002 = vmatpush1.msra.mxu0 0.0
      %1003 = vmatprep.subr.mxu0 0.0
      %1004 = vmatpush1.msra.mxu0 0.0
      %1005 = vmatprep.subr.mxu0 0.0
      %1006 = vmatpush1.msra.mxu0 0.0
      %1007 = vmatprep.subr.mxu0 0.0
      %1008 = vmatpush1.msra.mxu0 0.0
      %1009 = vmatprep.subr.mxu0 0.0
      %1010 = vmatpush1.msra.mxu0 0.0
      %1011 = vmatprep.subr.mxu0 0.0
      %1012 = vmatpush1.msra.mxu0 0.0
      %1013 = vmatprep.subr.mxu0 0.0
      %1014 = vmatpush1.msra.mxu0 0.0
      %1015 = vmatprep.subr.mxu0 0.0
      %1016 = vmatpush1.msra.mxu0 0.0
      %1017 = vmatprep.subr.mxu0 0.0
      %1018 = vmatpush1.msra.mxu0 0.0
      %1019 = vmatprep.subr.mxu0 0.0
      %1020 = vmatpush1.msra.mxu0 0.0
      %1021 = vmatprep.subr.mxu0 0.0
      %1022 = vmatpush1.msra.mxu0 0.0
      %1023 = vmatprep.subr.mxu0 0.0
      %1024 = vmatpush1.msra.mxu0 0.0
      %1025 = vmatprep.subr.mxu0 0.0
      %1026 = vmatpush1.msra.mxu0 0.0
      %1027 = vmatprep.subr.mxu0 0.0
      %1028 = vmatpush1.msra.mxu0 0.0
      %1029 = vmatprep.subr.mxu0 0.0
      %1030 = vmatpush1.msra.mxu0 0.0
      %1031 = vmatprep.subr.mxu0 0.0
      %1032 = vmatpush1.msra.mxu0 0.0
      %1033 = vmatprep.subr.mxu0 0.0
      %1034 = vmatpush1.msra.mxu0 0.0
      %1035 = vmatprep.subr.mxu0 0.0
      %1036 = vmatpush1.msra.mxu0 0.0
      %1037 = vmatprep.subr.mxu0 0.0
      %1038 = vmatpush1.msra.mxu0 0.0
      %1039 = vmatprep.subr.mxu0 0.0
      %1040 = vmatpush1.msra.mxu0 0.0
      %1041 = vmatprep.subr.mxu0 0.0
      %1042 = vmatpush1.msra.mxu0 0.0
      %1043 = vmatprep.subr.mxu0 0.0
      %1044 = vmatpush1.msra.mxu0 0.0
      %1045 = vmatprep.subr.mxu0 0.0
      %1046 = vmatpush1.msra.mxu0 0.0
      %1047 = vmatprep.subr.mxu0 0.0
      %1048 = vmatpush1.msra.mxu0 0.0
      %1049 = vmatprep.subr.mxu0 0.0
      %1050 = vmatpush1.msra.mxu0 0.0
      %1051 = vmatprep.subr.mxu0 0.0
      %1052 = vmatpush1.msra.mxu0 0.0
      %1053 = vmatprep.subr.mxu0 0.0
      %1054 = vmatpush1.msra.mxu0 0.0
      %1055 = vmatprep.subr.mxu0 0.0
      %1056 = vmatpush1.msra.mxu0 0.0
      %1057 = vmatprep.mubr.f32.mxu0 0.0
      %1058 = vmatmul.mubr.f32.gmra.mrb[0].mxu0 %v987
      %v1059 = vpop.f32.mrb[0].mxu0
      %v1060 = vadd.f32 0.0, %v1059
      %v1061 = vpop.f32.mrb[0].mxu0
      %v1062 = vadd.f32 0.0, %v1061
      %1063 = vdwg.mxu0
      %v1064 = vadd.f32 %v973, %v1060
      %v1065 = vadd.f32 %v974, %v1062
      %s1066 = scalar_lea.vmem %s1, 32
      %v1067 = vld [vmem:[%s1066] sm:$0xf]
      %v1069 = vsel %vm326, %v1067, 0
      %v1072 = vsel %vm330, %v889, 0
      %v1075 = vsel %vm330, %v890, 0
      %1077 = vmatprep.subr.mxu0 %v1075
      %1078 = vmatpush1.msra.mxu0 %v1072
      %1079 = vmatprep.subr.mxu0 0.0
      %1080 = vmatpush1.msra.mxu0 0.0
      %1081 = vmatprep.subr.mxu0 0.0
      %1082 = vmatpush1.msra.mxu0 0.0
      %1083 = vmatprep.subr.mxu0 0.0
      %1084 = vmatpush1.msra.mxu0 0.0
      %1085 = vmatprep.subr.mxu0 0.0
      %1086 = vmatpush1.msra.mxu0 0.0
      %1087 = vmatprep.subr.mxu0 0.0
      %1088 = vmatpush1.msra.mxu0 0.0
      %1089 = vmatprep.subr.mxu0 0.0
      %1090 = vmatpush1.msra.mxu0 0.0
      %1091 = vmatprep.subr.mxu0 0.0
      %1092 = vmatpush1.msra.mxu0 0.0
      %1093 = vmatprep.subr.mxu0 0.0
      %1094 = vmatpush1.msra.mxu0 0.0
      %1095 = vmatprep.subr.mxu0 0.0
      %1096 = vmatpush1.msra.mxu0 0.0
      %1097 = vmatprep.subr.mxu0 0.0
      %1098 = vmatpush1.msra.mxu0 0.0
      %1099 = vmatprep.subr.mxu0 0.0
      %1100 = vmatpush1.msra.mxu0 0.0
      %1101 = vmatprep.subr.mxu0 0.0
      %1102 = vmatpush1.msra.mxu0 0.0
      %1103 = vmatprep.subr.mxu0 0.0
      %1104 = vmatpush1.msra.mxu0 0.0
      %1105 = vmatprep.subr.mxu0 0.0
      %1106 = vmatpush1.msra.mxu0 0.0
      %1107 = vmatprep.subr.mxu0 0.0
      %1108 = vmatpush1.msra.mxu0 0.0
      %1109 = vmatprep.subr.mxu0 0.0
      %1110 = vmatpush1.msra.mxu0 0.0
      %1111 = vmatprep.subr.mxu0 0.0
      %1112 = vmatpush1.msra.mxu0 0.0
      %1113 = vmatprep.subr.mxu0 0.0
      %1114 = vmatpush1.msra.mxu0 0.0
      %1115 = vmatprep.subr.mxu0 0.0
      %1116 = vmatpush1.msra.mxu0 0.0
      %1117 = vmatprep.subr.mxu0 0.0
      %1118 = vmatpush1.msra.mxu0 0.0
      %1119 = vmatprep.subr.mxu0 0.0
      %1120 = vmatpush1.msra.mxu0 0.0
      %1121 = vmatprep.subr.mxu0 0.0
      %1122 = vmatpush1.msra.mxu0 0.0
      %1123 = vmatprep.subr.mxu0 0.0
      %1124 = vmatpush1.msra.mxu0 0.0
      %1125 = vmatprep.subr.mxu0 0.0
      %1126 = vmatpush1.msra.mxu0 0.0
      %1127 = vmatprep.subr.mxu0 0.0
      %1128 = vmatpush1.msra.mxu0 0.0
      %1129 = vmatprep.subr.mxu0 0.0
      %1130 = vmatpush1.msra.mxu0 0.0
      %1131 = vmatprep.subr.mxu0 0.0
      %1132 = vmatpush1.msra.mxu0 0.0
      %1133 = vmatprep.subr.mxu0 0.0
      %1134 = vmatpush1.msra.mxu0 0.0
      %1135 = vmatprep.subr.mxu0 0.0
      %1136 = vmatpush1.msra.mxu0 0.0
      %1137 = vmatprep.subr.mxu0 0.0
      %1138 = vmatpush1.msra.mxu0 0.0
      %1139 = vmatprep.subr.mxu0 0.0
      %1140 = vmatpush1.msra.mxu0 0.0
      %1141 = vmatprep.mubr.f32.mxu0 0.0
      %1142 = vmatmul.mubr.f32.gmra.mrb[0].mxu0 %v1069
      %v1143 = vpop.f32.mrb[0].mxu0
      %v1144 = vadd.f32 0.0, %v1143
      %v1145 = vpop.f32.mrb[0].mxu0
      %v1146 = vadd.f32 0.0, %v1145
      %1147 = vdwg.mxu0
      %v1148 = vadd.f32 %v1064, %v1144
      %v1149 = vadd.f32 %v1065, %v1146
      %v1150 = vld [vmem:[%s2] sm:$0xf]
      %1152 = vset.pattern.permute.xlu0 0
      %1153 = vperm.xlu0 %1152, %v1150
      %v1154 = vpop.permute.xlu0 %1153
      %v1156 = vadd.f32 %v1148, %v1154
      %v1157 = vadd.f32 %v1149, %v1154
      %v1158 = vsel %vm330, %v1156, 0.0
      %v1159 = vsel %vm330, %v1157, 0.0
      %v1160 = vadd.f32 %v1158, %v1159
      %1161 = vadd.xlane.f32.xlu0 %v1160
      %v1162 = vpop.xlane.xlu0 %1161
      %v1163 = vmul.f32 %v1162, 0.00390625
      %v1164 = vsub.f32 %v1156, %v1163
      %v1165 = vsub.f32 %v1157, %v1163
      %v1166 = vmul.f32 %v1164, %v1164
      %v1167 = vmul.f32 %v1165, %v1165
      %v1168 = vsel %vm330, %v1166, 0.0
      %v1169 = vsel %vm330, %v1167, 0.0
      %v1170 = vadd.f32 %v1168, %v1169
      %1171 = vadd.xlane.f32.xlu0 %v1170
      %v1172 = vpop.xlane.xlu0 %1171
      %v1173 = vmul.f32 %v1172, 0.00390625
      %v1174 = vadd.f32 %v1173, 1e-05
      %v1175 = vrsqrt.pop %v1174
      %v1176 = vmul.f32 %v1164, %v1175
      %v1177 = vmul.f32 %v1165, %v1175
      %v1178 = vmax.f32 %v1176, 0.0
      %v1179 = vmax.f32 %v1177, 0.0
      %1181 = vrot.lane.b32.xlu0 %v1178, 113
      %v1182 = vpop.permute.xlu0 %1181
      %1184 = vst.msk [vmem:[#allocation2] sm:$0xf] %vm261, %v1182
      %v1186 = vcombine.low %v1178, %v1179
      %1187 = vrot.lane.b32.xlu0 %v1186, 17
      %v1188 = vpop.permute.xlu0 %1187
      %v1189 = vrot.slane %v1188, 4
      %v1190 = vsel %vm266, %v1189, %v1188
      %1193 = vst.msk [vmem:[#allocation2] sm:$0xff] %vm272, %v1190
      %1194 = vst.msk [vmem:[#allocation2 + $0x8] sm:$0xf] %vm274, %v1189
      %1195 = vrot.lane.b32.xlu0 %v1179, 49
      %v1196 = vpop.permute.xlu0 %1195
      %1198 = vst.msk [vmem:[#allocation2 + $0x8] sm:$0xf] %vm280, %v1196
      %v1199 = vld [vmem:[#allocation2] sm:$0xff]
      %v1200 = vld [vmem:[#allocation2] sm:$0xff]
      %v1201 = vld [vmem:[#allocation2 + $0x8] sm:$0xf]
      %v1204 = vcombine.high %v1200, %v1200
      %1205 = vrot.lane.b32.xlu0 %v1200, 126
      %v1206 = vpop.permute.xlu0 %1205
      %1207 = vrot.lane.b32.xlu0 %v1204, 126
      %v1208 = vpop.permute.xlu0 %1207
      %1209 = vrot.lane.b32.xlu0 %v1201, 126
      %v1210 = vpop.permute.xlu0 %1209
      %v1211 = vsel %vm298, %v1206, %v1208
      %v1212 = vsel %vm298, %v1208, %v1210
      %v1216 = vcombine.high %v1199, %v1199
      %v1218 = vsel %vm287, %v1211, %v1199
      %v1219 = vsel %vm288, %v1212, %v1216
      %v1220 = vsel %vm310, %v1199, %v1211
      %v1221 = vsel %vm311, %v1216, %v1212
      %v1222 = vld [vmem:[%s3] sm:$0xf]
      %s1223 = scalar_lea.vmem %s3, 4
      %v1224 = vld [vmem:[%s1223] sm:$0xf]
      %1225 = vrot.lane.b32.xlu0 %v1200, 127
      %v1226 = vpop.permute.xlu0 %1225
      %1227 = vrot.lane.b32.xlu0 %v1204, 127
      %v1228 = vpop.permute.xlu0 %1227
      %1229 = vrot.lane.b32.xlu0 %v1201, 127
      %v1230 = vpop.permute.xlu0 %1229
      %v1231 = vsel %vm323, %v1226, %v1228
      %v1232 = vsel %vm323, %v1228, %v1230
      %v1234 = vsel %vm326, %v1224, 0
      %v1236 = vsel %vm330, %v1231, 0
      %v1238 = vsel %vm330, %v1232, 0
      %1240 = vmatprep.subr.mxu0 %v1238
      %1241 = vmatpush1.msra.mxu0 %v1236
      %1242 = vmatprep.subr.mxu0 0.0
      %1243 = vmatpush1.msra.mxu0 0.0
      %1244 = vmatprep.subr.mxu0 0.0
      %1245 = vmatpush1.msra.mxu0 0.0
      %1246 = vmatprep.subr.mxu0 0.0
      %1247 = vmatpush1.msra.mxu0 0.0
      %1248 = vmatprep.subr.mxu0 0.0
      %1249 = vmatpush1.msra.mxu0 0.0
      %1250 = vmatprep.subr.mxu0 0.0
      %1251 = vmatpush1.msra.mxu0 0.0
      %1252 = vmatprep.subr.mxu0 0.0
      %1253 = vmatpush1.msra.mxu0 0.0
      %1254 = vmatprep.subr.mxu0 0.0
      %1255 = vmatpush1.msra.mxu0 0.0
      %1256 = vmatprep.subr.mxu0 0.0
      %1257 = vmatpush1.msra.mxu0 0.0
      %1258 = vmatprep.subr.mxu0 0.0
      %1259 = vmatpush1.msra.mxu0 0.0
      %1260 = vmatprep.subr.mxu0 0.0
      %1261 = vmatpush1.msra.mxu0 0.0
      %1262 = vmatprep.subr.mxu0 0.0
      %1263 = vmatpush1.msra.mxu0 0.0
      %1264 = vmatprep.subr.mxu0 0.0
      %1265 = vmatpush1.msra.mxu0 0.0
      %1266 = vmatprep.subr.mxu0 0.0
      %1267 = vmatpush1.msra.mxu0 0.0
      %1268 = vmatprep.subr.mxu0 0.0
      %1269 = vmatpush1.msra.mxu0 0.0
      %1270 = vmatprep.subr.mxu0 0.0
      %1271 = vmatpush1.msra.mxu0 0.0
      %1272 = vmatprep.subr.mxu0 0.0
      %1273 = vmatpush1.msra.mxu0 0.0
      %1274 = vmatprep.subr.mxu0 0.0
      %1275 = vmatpush1.msra.mxu0 0.0
      %1276 = vmatprep.subr.mxu0 0.0
      %1277 = vmatpush1.msra.mxu0 0.0
      %1278 = vmatprep.subr.mxu0 0.0
      %1279 = vmatpush1.msra.mxu0 0.0
      %1280 = vmatprep.subr.mxu0 0.0
      %1281 = vmatpush1.msra.mxu0 0.0
      %1282 = vmatprep.subr.mxu0 0.0
      %1283 = vmatpush1.msra.mxu0 0.0
      %1284 = vmatprep.subr.mxu0 0.0
      %1285 = vmatpush1.msra.mxu0 0.0
      %1286 = vmatprep.subr.mxu0 0.0
      %1287 = vmatpush1.msra.mxu0 0.0
      %1288 = vmatprep.subr.mxu0 0.0
      %1289 = vmatpush1.msra.mxu0 0.0
      %1290 = vmatprep.subr.mxu0 0.0
      %1291 = vmatpush1.msra.mxu0 0.0
      %1292 = vmatprep.subr.mxu0 0.0
      %1293 = vmatpush1.msra.mxu0 0.0
      %1294 = vmatprep.subr.mxu0 0.0
      %1295 = vmatpush1.msra.mxu0 0.0
      %1296 = vmatprep.subr.mxu0 0.0
      %1297 = vmatpush1.msra.mxu0 0.0
      %1298 = vmatprep.subr.mxu0 0.0
      %1299 = vmatpush1.msra.mxu0 0.0
      %1300 = vmatprep.subr.mxu0 0.0
      %1301 = vmatpush1.msra.mxu0 0.0
      %1302 = vmatprep.subr.mxu0 0.0
      %1303 = vmatpush1.msra.mxu0 0.0
      %1304 = vmatprep.mubr.f32.mxu0 0.0
      %1305 = vmatmul.mubr.f32.gmra.mrb[0].mxu0 %v1234
      %v1306 = vpop.f32.mrb[0].mxu0
      %v1307 = vadd.f32 0.0, %v1306
      %v1308 = vpop.f32.mrb[0].mxu0
      %v1309 = vadd.f32 0.0, %v1308
      %1310 = vdwg.mxu0
      %v1312 = vsel %vm326, %v1222, 0
      %v1315 = vsel %vm330, %v1218, 0
      %v1318 = vsel %vm330, %v1219, 0
      %1320 = vmatprep.subr.mxu0 %v1318
      %1321 = vmatpush1.msra.mxu0 %v1315
      %1322 = vmatprep.subr.mxu0 0.0
      %1323 = vmatpush1.msra.mxu0 0.0
      %1324 = vmatprep.subr.mxu0 0.0
      %1325 = vmatpush1.msra.mxu0 0.0
      %1326 = vmatprep.subr.mxu0 0.0
      %1327 = vmatpush1.msra.mxu0 0.0
      %1328 = vmatprep.subr.mxu0 0.0
      %1329 = vmatpush1.msra.mxu0 0.0
      %1330 = vmatprep.subr.mxu0 0.0
      %1331 = vmatpush1.msra.mxu0 0.0
      %1332 = vmatprep.subr.mxu0 0.0
      %1333 = vmatpush1.msra.mxu0 0.0
      %1334 = vmatprep.subr.mxu0 0.0
      %1335 = vmatpush1.msra.mxu0 0.0
      %1336 = vmatprep.subr.mxu0 0.0
      %1337 = vmatpush1.msra.mxu0 0.0
      %1338 = vmatprep.subr.mxu0 0.0
      %1339 = vmatpush1.msra.mxu0 0.0
      %1340 = vmatprep.subr.mxu0 0.0
      %1341 = vmatpush1.msra.mxu0 0.0
      %1342 = vmatprep.subr.mxu0 0.0
      %1343 = vmatpush1.msra.mxu0 0.0
      %1344 = vmatprep.subr.mxu0 0.0
      %1345 = vmatpush1.msra.mxu0 0.0
      %1346 = vmatprep.subr.mxu0 0.0
      %1347 = vmatpush1.msra.mxu0 0.0
      %1348 = vmatprep.subr.mxu0 0.0
      %1349 = vmatpush1.msra.mxu0 0.0
      %1350 = vmatprep.subr.mxu0 0.0
      %1351 = vmatpush1.msra.mxu0 0.0
      %1352 = vmatprep.subr.mxu0 0.0
      %1353 = vmatpush1.msra.mxu0 0.0
      %1354 = vmatprep.subr.mxu0 0.0
      %1355 = vmatpush1.msra.mxu0 0.0
      %1356 = vmatprep.subr.mxu0 0.0
      %1357 = vmatpush1.msra.mxu0 0.0
      %1358 = vmatprep.subr.mxu0 0.0
      %1359 = vmatpush1.msra.mxu0 0.0
      %1360 = vmatprep.subr.mxu0 0.0
      %1361 = vmatpush1.msra.mxu0 0.0
      %1362 = vmatprep.subr.mxu0 0.0
      %1363 = vmatpush1.msra.mxu0 0.0
      %1364 = vmatprep.subr.mxu0 0.0
      %1365 = vmatpush1.msra.mxu0 0.0
      %1366 = vmatprep.subr.mxu0 0.0
      %1367 = vmatpush1.msra.mxu0 0.0
      %1368 = vmatprep.subr.mxu0 0.0
      %1369 = vmatpush1.msra.mxu0 0.0
      %1370 = vmatprep.subr.mxu0 0.0
      %1371 = vmatpush1.msra.mxu0 0.0
      %1372 = vmatprep.subr.mxu0 0.0
      %1373 = vmatpush1.msra.mxu0 0.0
      %1374 = vmatprep.subr.mxu0 0.0
      %1375 = vmatpush1.msra.mxu0 0.0
      %1376 = vmatprep.subr.mxu0 0.0
      %1377 = vmatpush1.msra.mxu0 0.0
      %1378 = vmatprep.subr.mxu0 0.0
      %1379 = vmatpush1.msra.mxu0 0.0
      %1380 = vmatprep.subr.mxu0 0.0
      %1381 = vmatpush1.msra.mxu0 0.0
      %1382 = vmatprep.subr.mxu0 0.0
      %1383 = vmatpush1.msra.mxu0 0.0
      %1384 = vmatprep.mubr.f32.mxu0 0.0
      %1385 = vmatmul.mubr.f32.gmra.mrb[0].mxu0 %v1312
      %v1386 = vpop.f32.mrb[0].mxu0
      %v1387 = vadd.f32 %v1307, %v1386
      %v1388 = vpop.f32.mrb[0].mxu0
      %v1389 = vadd.f32 %v1309, %v1388
      %1390 = vdwg.mxu0
      %s1391 = scalar_lea.vmem %s3, 8
      %v1392 = vld [vmem:[%s1391] sm:$0xf]
      %v1394 = vsel %vm326, %v1392, 0
      %v1397 = vsel %vm330, %v1220, 0
      %v1400 = vsel %vm330, %v1221, 0
      %1402 = vmatprep.subr.mxu0 %v1400
      %1403 = vmatpush1.msra.mxu0 %v1397
      %1404 = vmatprep.subr.mxu0 0.0
      %1405 = vmatpush1.msra.mxu0 0.0
      %1406 = vmatprep.subr.mxu0 0.0
      %1407 = vmatpush1.msra.mxu0 0.0
      %1408 = vmatprep.subr.mxu0 0.0
      %1409 = vmatpush1.msra.mxu0 0.0
      %1410 = vmatprep.subr.mxu0 0.0
      %1411 = vmatpush1.msra.mxu0 0.0
      %1412 = vmatprep.subr.mxu0 0.0
      %1413 = vmatpush1.msra.mxu0 0.0
      %1414 = vmatprep.subr.mxu0 0.0
      %1415 = vmatpush1.msra.mxu0 0.0
      %1416 = vmatprep.subr.mxu0 0.0
      %1417 = vmatpush1.msra.mxu0 0.0
      %1418 = vmatprep.subr.mxu0 0.0
      %1419 = vmatpush1.msra.mxu0 0.0
      %1420 = vmatprep.subr.mxu0 0.0
      %1421 = vmatpush1.msra.mxu0 0.0
      %1422 = vmatprep.subr.mxu0 0.0
      %1423 = vmatpush1.msra.mxu0 0.0
      %1424 = vmatprep.subr.mxu0 0.0
      %1425 = vmatpush1.msra.mxu0 0.0
      %1426 = vmatprep.subr.mxu0 0.0
      %1427 = vmatpush1.msra.mxu0 0.0
      %1428 = vmatprep.subr.mxu0 0.0
      %1429 = vmatpush1.msra.mxu0 0.0
      %1430 = vmatprep.subr.mxu0 0.0
      %1431 = vmatpush1.msra.mxu0 0.0
      %1432 = vmatprep.subr.mxu0 0.0
      %1433 = vmatpush1.msra.mxu0 0.0
      %1434 = vmatprep.subr.mxu0 0.0
      %1435 = vmatpush1.msra.mxu0 0.0
      %1436 = vmatprep.subr.mxu0 0.0
      %1437 = vmatpush1.msra.mxu0 0.0
      %1438 = vmatprep.subr.mxu0 0.0
      %1439 = vmatpush1.msra.mxu0 0.0
      %1440 = vmatprep.subr.mxu0 0.0
      %1441 = vmatpush1.msra.mxu0 0.0
      %1442 = vmatprep.subr.mxu0 0.0
      %1443 = vmatpush1.msra.mxu0 0.0
      %1444 = vmatprep.subr.mxu0 0.0
      %1445 = vmatpush1.msra.mxu0 0.0
      %1446 = vmatprep.subr.mxu0 0.0
      %1447 = vmatpush1.msra.mxu0 0.0
      %1448 = vmatprep.subr.mxu0 0.0
      %1449 = vmatpush1.msra.mxu0 0.0
      %1450 = vmatprep.subr.mxu0 0.0
      %1451 = vmatpush1.msra.mxu0 0.0
      %1452 = vmatprep.subr.mxu0 0.0
      %1453 = vmatpush1.msra.mxu0 0.0
      %1454 = vmatprep.subr.mxu0 0.0
      %1455 = vmatpush1.msra.mxu0 0.0
      %1456 = vmatprep.subr.mxu0 0.0
      %1457 = vmatpush1.msra.mxu0 0.0
      %1458 = vmatprep.subr.mxu0 0.0
      %1459 = vmatpush1.msra.mxu0 0.0
      %1460 = vmatprep.subr.mxu0 0.0
      %1461 = vmatpush1.msra.mxu0 0.0
      %1462 = vmatprep.subr.mxu0 0.0
      %1463 = vmatpush1.msra.mxu0 0.0
      %1464 = vmatprep.subr.mxu0 0.0
      %1465 = vmatpush1.msra.mxu0 0.0
      %1466 = vmatprep.mubr.f32.mxu0 0.0
      %1467 = vmatmul.mubr.f32.gmra.mrb[0].mxu0 %v1394
      %v1468 = vpop.f32.mrb[0].mxu0
      %v1469 = vadd.f32 0.0, %v1468
      %v1470 = vpop.f32.mrb[0].mxu0
      %v1471 = vadd.f32 0.0, %v1470
      %1472 = vdwg.mxu0
      %v1473 = vadd.f32 %v1387, %v1469
      %v1474 = vadd.f32 %v1389, %v1471
      %v1475 = vld [vmem:[#allocation2] sm:$0xff]
      %v1476 = vld [vmem:[#allocation2 + $0x8] sm:$0xf]
      %v1479 = vcombine.high %v1475, %v1475
      %1480 = vrot.lane.b32.xlu0 %v1475, 110
      %v1481 = vpop.permute.xlu0 %1480
      %1482 = vrot.lane.b32.xlu0 %v1479, 110
      %v1483 = vpop.permute.xlu0 %1482
      %1484 = vrot.lane.b32.xlu0 %v1476, 110
      %v1485 = vpop.permute.xlu0 %1484
      %v1486 = vsel %vm581, %v1481, %v1483
      %v1487 = vsel %vm581, %v1483, %v1485
      %1490 = vrot.lane.b32.xlu0 %v1475, 112
      %v1491 = vpop.permute.xlu0 %1490
      %1492 = vrot.lane.b32.xlu0 %v1479, 112
      %v1493 = vpop.permute.xlu0 %1492
      %1494 = vrot.lane.b32.xlu0 %v1476, 112
      %v1495 = vpop.permute.xlu0 %1494
      %v1496 = vsel %vm592, %v1491, %v1493
      %v1497 = vsel %vm592, %v1493, %v1495
      %v1500 = vsel %vm287, %v1486, %v1496
      %v1501 = vsel %vm288, %v1487, %v1497
      %v1502 = vsel %vm310, %v1496, %v1486
      %v1503 = vsel %vm311, %v1497, %v1487
      %s1504 = scalar_lea.vmem %s3, 12
      %v1505 = vld [vmem:[%s1504] sm:$0xf]
      %v1507 = vsel %vm326, %v1505, 0
      %v1510 = vsel %vm330, %v1500, 0
      %v1513 = vsel %vm330, %v1501, 0
      %1515 = vmatprep.subr.mxu0 %v1513
      %1516 = vmatpush1.msra.mxu0 %v1510
      %1517 = vmatprep.subr.mxu0 0.0
      %1518 = vmatpush1.msra.mxu0 0.0
      %1519 = vmatprep.subr.mxu0 0.0
      %1520 = vmatpush1.msra.mxu0 0.0
      %1521 = vmatprep.subr.mxu0 0.0
      %1522 = vmatpush1.msra.mxu0 0.0
      %1523 = vmatprep.subr.mxu0 0.0
      %1524 = vmatpush1.msra.mxu0 0.0
      %1525 = vmatprep.subr.mxu0 0.0
      %1526 = vmatpush1.msra.mxu0 0.0
      %1527 = vmatprep.subr.mxu0 0.0
      %1528 = vmatpush1.msra.mxu0 0.0
      %1529 = vmatprep.subr.mxu0 0.0
      %1530 = vmatpush1.msra.mxu0 0.0
      %1531 = vmatprep.subr.mxu0 0.0
      %1532 = vmatpush1.msra.mxu0 0.0
      %1533 = vmatprep.subr.mxu0 0.0
      %1534 = vmatpush1.msra.mxu0 0.0
      %1535 = vmatprep.subr.mxu0 0.0
      %1536 = vmatpush1.msra.mxu0 0.0
      %1537 = vmatprep.subr.mxu0 0.0
      %1538 = vmatpush1.msra.mxu0 0.0
      %1539 = vmatprep.subr.mxu0 0.0
      %1540 = vmatpush1.msra.mxu0 0.0
      %1541 = vmatprep.subr.mxu0 0.0
      %1542 = vmatpush1.msra.mxu0 0.0
      %1543 = vmatprep.subr.mxu0 0.0
      %1544 = vmatpush1.msra.mxu0 0.0
      %1545 = vmatprep.subr.mxu0 0.0
      %1546 = vmatpush1.msra.mxu0 0.0
      %1547 = vmatprep.subr.mxu0 0.0
      %1548 = vmatpush1.msra.mxu0 0.0
      %1549 = vmatprep.subr.mxu0 0.0
      %1550 = vmatpush1.msra.mxu0 0.0
      %1551 = vmatprep.subr.mxu0 0.0
      %1552 = vmatpush1.msra.mxu0 0.0
      %1553 = vmatprep.subr.mxu0 0.0
      %1554 = vmatpush1.msra.mxu0 0.0
      %1555 = vmatprep.subr.mxu0 0.0
      %1556 = vmatpush1.msra.mxu0 0.0
      %1557 = vmatprep.subr.mxu0 0.0
      %1558 = vmatpush1.msra.mxu0 0.0
      %1559 = vmatprep.subr.mxu0 0.0
      %1560 = vmatpush1.msra.mxu0 0.0
      %1561 = vmatprep.subr.mxu0 0.0
      %1562 = vmatpush1.msra.mxu0 0.0
      %1563 = vmatprep.subr.mxu0 0.0
      %1564 = vmatpush1.msra.mxu0 0.0
      %1565 = vmatprep.subr.mxu0 0.0
      %1566 = vmatpush1.msra.mxu0 0.0
      %1567 = vmatprep.subr.mxu0 0.0
      %1568 = vmatpush1.msra.mxu0 0.0
      %1569 = vmatprep.subr.mxu0 0.0
      %1570 = vmatpush1.msra.mxu0 0.0
      %1571 = vmatprep.subr.mxu0 0.0
      %1572 = vmatpush1.msra.mxu0 0.0
      %1573 = vmatprep.subr.mxu0 0.0
      %1574 = vmatpush1.msra.mxu0 0.0
      %1575 = vmatprep.subr.mxu0 0.0
      %1576 = vmatpush1.msra.mxu0 0.0
      %1577 = vmatprep.subr.mxu0 0.0
      %1578 = vmatpush1.msra.mxu0 0.0
      %1579 = vmatprep.mubr.f32.mxu0 0.0
      %1580 = vmatmul.mubr.f32.gmra.mrb[0].mxu0 %v1507
      %v1581 = vpop.f32.mrb[0].mxu0
      %v1582 = vadd.f32 0.0, %v1581
      %v1583 = vpop.f32.mrb[0].mxu0
      %v1584 = vadd.f32 0.0, %v1583
      %1585 = vdwg.mxu0
      %v1586 = vadd.f32 %v1473, %v1582
      %v1587 = vadd.f32 %v1474, %v1584
      %s1588 = scalar_lea.vmem %s3, 16
      %v1589 = vld [vmem:[%s1588] sm:$0xf]
      %1590 = vrot.lane.b32.xlu0 %v1475, 111
      %v1591 = vpop.permute.xlu0 %1590
      %1592 = vrot.lane.b32.xlu0 %v1479, 111
      %v1593 = vpop.permute.xlu0 %1592
      %1594 = vrot.lane.b32.xlu0 %v1476, 111
      %v1595 = vpop.permute.xlu0 %1594
      %v1596 = vsel %vm693, %v1591, %v1593
      %v1597 = vsel %vm693, %v1593, %v1595
      %v1599 = vsel %vm326, %v1589, 0
      %v1601 = vsel %vm330, %v1596, 0
      %v1603 = vsel %vm330, %v1597, 0
      %1605 = vmatprep.subr.mxu0 %v1603
      %1606 = vmatpush1.msra.mxu0 %v1601
      %1607 = vmatprep.subr.mxu0 0.0
      %1608 = vmatpush1.msra.mxu0 0.0
      %1609 = vmatprep.subr.mxu0 0.0
      %1610 = vmatpush1.msra.mxu0 0.0
      %1611 = vmatprep.subr.mxu0 0.0
      %1612 = vmatpush1.msra.mxu0 0.0
      %1613 = vmatprep.subr.mxu0 0.0
      %1614 = vmatpush1.msra.mxu0 0.0
      %1615 = vmatprep.subr.mxu0 0.0
      %1616 = vmatpush1.msra.mxu0 0.0
      %1617 = vmatprep.subr.mxu0 0.0
      %1618 = vmatpush1.msra.mxu0 0.0
      %1619 = vmatprep.subr.mxu0 0.0
      %1620 = vmatpush1.msra.mxu0 0.0
      %1621 = vmatprep.subr.mxu0 0.0
      %1622 = vmatpush1.msra.mxu0 0.0
      %1623 = vmatprep.subr.mxu0 0.0
      %1624 = vmatpush1.msra.mxu0 0.0
      %1625 = vmatprep.subr.mxu0 0.0
      %1626 = vmatpush1.msra.mxu0 0.0
      %1627 = vmatprep.subr.mxu0 0.0
      %1628 = vmatpush1.msra.mxu0 0.0
      %1629 = vmatprep.subr.mxu0 0.0
      %1630 = vmatpush1.msra.mxu0 0.0
      %1631 = vmatprep.subr.mxu0 0.0
      %1632 = vmatpush1.msra.mxu0 0.0
      %1633 = vmatprep.subr.mxu0 0.0
      %1634 = vmatpush1.msra.mxu0 0.0
      %1635 = vmatprep.subr.mxu0 0.0
      %1636 = vmatpush1.msra.mxu0 0.0
      %1637 = vmatprep.subr.mxu0 0.0
      %1638 = vmatpush1.msra.mxu0 0.0
      %1639 = vmatprep.subr.mxu0 0.0
      %1640 = vmatpush1.msra.mxu0 0.0
      %1641 = vmatprep.subr.mxu0 0.0
      %1642 = vmatpush1.msra.mxu0 0.0
      %1643 = vmatprep.subr.mxu0 0.0
      %1644 = vmatpush1.msra.mxu0 0.0
      %1645 = vmatprep.subr.mxu0 0.0
      %1646 = vmatpush1.msra.mxu0 0.0
      %1647 = vmatprep.subr.mxu0 0.0
      %1648 = vmatpush1.msra.mxu0 0.0
      %1649 = vmatprep.subr.mxu0 0.0
      %1650 = vmatpush1.msra.mxu0 0.0
      %1651 = vmatprep.subr.mxu0 0.0
      %1652 = vmatpush1.msra.mxu0 0.0
      %1653 = vmatprep.subr.mxu0 0.0
      %1654 = vmatpush1.msra.mxu0 0.0
      %1655 = vmatprep.subr.mxu0 0.0
      %1656 = vmatpush1.msra.mxu0 0.0
      %1657 = vmatprep.subr.mxu0 0.0
      %1658 = vmatpush1.msra.mxu0 0.0
      %1659 = vmatprep.subr.mxu0 0.0
      %1660 = vmatpush1.msra.mxu0 0.0
      %1661 = vmatprep.subr.mxu0 0.0
      %1662 = vmatpush1.msra.mxu0 0.0
      %1663 = vmatprep.subr.mxu0 0.0
      %1664 = vmatpush1.msra.mxu0 0.0
      %1665 = vmatprep.subr.mxu0 0.0
      %1666 = vmatpush1.msra.mxu0 0.0
      %1667 = vmatprep.subr.mxu0 0.0
      %1668 = vmatpush1.msra.mxu0 0.0
      %1669 = vmatprep.mubr.f32.mxu0 0.0
      %1670 = vmatmul.mubr.f32.gmra.mrb[0].mxu0 %v1599
      %v1671 = vpop.f32.mrb[0].mxu0
      %v1672 = vadd.f32 0.0, %v1671
      %v1673 = vpop.f32.mrb[0].mxu0
      %v1674 = vadd.f32 0.0, %v1673
      %1675 = vdwg.mxu0
      %v1676 = vadd.f32 %v1586, %v1672
      %v1677 = vadd.f32 %v1587, %v1674
      %s1678 = scalar_lea.vmem %s3, 20
      %v1679 = vld [vmem:[%s1678] sm:$0xf]
      %v1681 = vsel %vm326, %v1679, 0
      %v1684 = vsel %vm330, %v1502, 0
      %v1687 = vsel %vm330, %v1503, 0
      %1689 = vmatprep.subr.mxu0 %v1687
      %1690 = vmatpush1.msra.mxu0 %v1684
      %1691 = vmatprep.subr.mxu0 0.0
      %1692 = vmatpush1.msra.mxu0 0.0
      %1693 = vmatprep.subr.mxu0 0.0
      %1694 = vmatpush1.msra.mxu0 0.0
      %1695 = vmatprep.subr.mxu0 0.0
      %1696 = vmatpush1.msra.mxu0 0.0
      %1697 = vmatprep.subr.mxu0 0.0
      %1698 = vmatpush1.msra.mxu0 0.0
      %1699 = vmatprep.subr.mxu0 0.0
      %1700 = vmatpush1.msra.mxu0 0.0
      %1701 = vmatprep.subr.mxu0 0.0
      %1702 = vmatpush1.msra.mxu0 0.0
      %1703 = vmatprep.subr.mxu0 0.0
      %1704 = vmatpush1.msra.mxu0 0.0
      %1705 = vmatprep.subr.mxu0 0.0
      %1706 = vmatpush1.msra.mxu0 0.0
      %1707 = vmatprep.subr.mxu0 0.0
      %1708 = vmatpush1.msra.mxu0 0.0
      %1709 = vmatprep.subr.mxu0 0.0
      %1710 = vmatpush1.msra.mxu0 0.0
      %1711 = vmatprep.subr.mxu0 0.0
      %1712 = vmatpush1.msra.mxu0 0.0
      %1713 = vmatprep.subr.mxu0 0.0
      %1714 = vmatpush1.msra.mxu0 0.0
      %1715 = vmatprep.subr.mxu0 0.0
      %1716 = vmatpush1.msra.mxu0 0.0
      %1717 = vmatprep.subr.mxu0 0.0
      %1718 = vmatpush1.msra.mxu0 0.0
      %1719 = vmatprep.subr.mxu0 0.0
      %1720 = vmatpush1.msra.mxu0 0.0
      %1721 = vmatprep.subr.mxu0 0.0
      %1722 = vmatpush1.msra.mxu0 0.0
      %1723 = vmatprep.subr.mxu0 0.0
      %1724 = vmatpush1.msra.mxu0 0.0
      %1725 = vmatprep.subr.mxu0 0.0
      %1726 = vmatpush1.msra.mxu0 0.0
      %1727 = vmatprep.subr.mxu0 0.0
      %1728 = vmatpush1.msra.mxu0 0.0
      %1729 = vmatprep.subr.mxu0 0.0
      %1730 = vmatpush1.msra.mxu0 0.0
      %1731 = vmatprep.subr.mxu0 0.0
      %1732 = vmatpush1.msra.mxu0 0.0
      %1733 = vmatprep.subr.mxu0 0.0
      %1734 = vmatpush1.msra.mxu0 0.0
      %1735 = vmatprep.subr.mxu0 0.0
      %1736 = vmatpush1.msra.mxu0 0.0
      %1737 = vmatprep.subr.mxu0 0.0
      %1738 = vmatpush1.msra.mxu0 0.0
      %1739 = vmatprep.subr.mxu0 0.0
      %1740 = vmatpush1.msra.mxu0 0.0
      %1741 = vmatprep.subr.mxu0 0.0
      %1742 = vmatpush1.msra.mxu0 0.0
      %1743 = vmatprep.subr.mxu0 0.0
      %1744 = vmatpush1.msra.mxu0 0.0
      %1745 = vmatprep.subr.mxu0 0.0
      %1746 = vmatpush1.msra.mxu0 0.0
      %1747 = vmatprep.subr.mxu0 0.0
      %1748 = vmatpush1.msra.mxu0 0.0
      %1749 = vmatprep.subr.mxu0 0.0
      %1750 = vmatpush1.msra.mxu0 0.0
      %1751 = vmatprep.subr.mxu0 0.0
      %1752 = vmatpush1.msra.mxu0 0.0
      %1753 = vmatprep.mubr.f32.mxu0 0.0
      %1754 = vmatmul.mubr.f32.gmra.mrb[0].mxu0 %v1681
      %v1755 = vpop.f32.mrb[0].mxu0
      %v1756 = vadd.f32 0.0, %v1755
      %v1757 = vpop.f32.mrb[0].mxu0
      %v1758 = vadd.f32 0.0, %v1757
      %1759 = vdwg.mxu0
      %v1760 = vadd.f32 %v1676, %v1756
      %v1761 = vadd.f32 %v1677, %v1758
      %v1762 = vld [vmem:[#allocation2] sm:$0xff]
      %v1763 = vld [vmem:[#allocation2 + $0x8] sm:$0xf]
      %v1766 = vcombine.high %v1762, %v1762
      %1767 = vrot.lane.b32.xlu0 %v1762, 94
      %v1768 = vpop.permute.xlu0 %1767
      %1769 = vrot.lane.b32.xlu0 %v1766, 94
      %v1770 = vpop.permute.xlu0 %1769
      %1771 = vrot.lane.b32.xlu0 %v1763, 94
      %v1772 = vpop.permute.xlu0 %1771
      %v1773 = vsel %vm871, %v1768, %v1770
      %v1774 = vsel %vm871, %v1770, %v1772
      %1777 = vrot.lane.b32.xlu0 %v1762, 96
      %v1778 = vpop.permute.xlu0 %1777
      %1779 = vrot.lane.b32.xlu0 %v1766, 96
      %v1780 = vpop.permute.xlu0 %1779
      %1781 = vrot.lane.b32.xlu0 %v1763, 96
      %v1782 = vpop.permute.xlu0 %1781
      %v1783 = vsel %vm882, %v1778, %v1780
      %v1784 = vsel %vm882, %v1780, %v1782
      %v1787 = vsel %vm287, %v1773, %v1783
      %v1788 = vsel %vm288, %v1774, %v1784
      %v1789 = vsel %vm310, %v1783, %v1773
      %v1790 = vsel %vm311, %v1784, %v1774
      %s1791 = scalar_lea.vmem %s3, 24
      %v1792 = vld [vmem:[%s1791] sm:$0xf]
      %v1794 = vsel %vm326, %v1792, 0
      %v1797 = vsel %vm330, %v1787, 0
      %v1800 = vsel %vm330, %v1788, 0
      %1802 = vmatprep.subr.mxu0 %v1800
      %1803 = vmatpush1.msra.mxu0 %v1797
      %1804 = vmatprep.subr.mxu0 0.0
      %1805 = vmatpush1.msra.mxu0 0.0
      %1806 = vmatprep.subr.mxu0 0.0
      %1807 = vmatpush1.msra.mxu0 0.0
      %1808 = vmatprep.subr.mxu0 0.0
      %1809 = vmatpush1.msra.mxu0 0.0
      %1810 = vmatprep.subr.mxu0 0.0
      %1811 = vmatpush1.msra.mxu0 0.0
      %1812 = vmatprep.subr.mxu0 0.0
      %1813 = vmatpush1.msra.mxu0 0.0
      %1814 = vmatprep.subr.mxu0 0.0
      %1815 = vmatpush1.msra.mxu0 0.0
      %1816 = vmatprep.subr.mxu0 0.0
      %1817 = vmatpush1.msra.mxu0 0.0
      %1818 = vmatprep.subr.mxu0 0.0
      %1819 = vmatpush1.msra.mxu0 0.0
      %1820 = vmatprep.subr.mxu0 0.0
      %1821 = vmatpush1.msra.mxu0 0.0
      %1822 = vmatprep.subr.mxu0 0.0
      %1823 = vmatpush1.msra.mxu0 0.0
      %1824 = vmatprep.subr.mxu0 0.0
      %1825 = vmatpush1.msra.mxu0 0.0
      %1826 = vmatprep.subr.mxu0 0.0
      %1827 = vmatpush1.msra.mxu0 0.0
      %1828 = vmatprep.subr.mxu0 0.0
      %1829 = vmatpush1.msra.mxu0 0.0
      %1830 = vmatprep.subr.mxu0 0.0
      %1831 = vmatpush1.msra.mxu0 0.0
      %1832 = vmatprep.subr.mxu0 0.0
      %1833 = vmatpush1.msra.mxu0 0.0
      %1834 = vmatprep.subr.mxu0 0.0
      %1835 = vmatpush1.msra.mxu0 0.0
      %1836 = vmatprep.subr.mxu0 0.0
      %1837 = vmatpush1.msra.mxu0 0.0
      %1838 = vmatprep.subr.mxu0 0.0
      %1839 = vmatpush1.msra.mxu0 0.0
      %1840 = vmatprep.subr.mxu0 0.0
      %1841 = vmatpush1.msra.mxu0 0.0
      %1842 = vmatprep.subr.mxu0 0.0
      %1843 = vmatpush1.msra.mxu0 0.0
      %1844 = vmatprep.subr.mxu0 0.0
      %1845 = vmatpush1.msra.mxu0 0.0
      %1846 = vmatprep.subr.mxu0 0.0
      %1847 = vmatpush1.msra.mxu0 0.0
      %1848 = vmatprep.subr.mxu0 0.0
      %1849 = vmatpush1.msra.mxu0 0.0
      %1850 = vmatprep.subr.mxu0 0.0
      %1851 = vmatpush1.msra.mxu0 0.0
      %1852 = vmatprep.subr.mxu0 0.0
      %1853 = vmatpush1.msra.mxu0 0.0
      %1854 = vmatprep.subr.mxu0 0.0
      %1855 = vmatpush1.msra.mxu0 0.0
      %1856 = vmatprep.subr.mxu0 0.0
      %1857 = vmatpush1.msra.mxu0 0.0
      %1858 = vmatprep.subr.mxu0 0.0
      %1859 = vmatpush1.msra.mxu0 0.0
      %1860 = vmatprep.subr.mxu0 0.0
      %1861 = vmatpush1.msra.mxu0 0.0
      %1862 = vmatprep.subr.mxu0 0.0
      %1863 = vmatpush1.msra.mxu0 0.0
      %1864 = vmatprep.subr.mxu0 0.0
      %1865 = vmatpush1.msra.mxu0 0.0
      %1866 = vmatprep.mubr.f32.mxu0 0.0
      %1867 = vmatmul.mubr.f32.gmra.mrb[0].mxu0 %v1794
      %v1868 = vpop.f32.mrb[0].mxu0
      %v1869 = vadd.f32 0.0, %v1868
      %v1870 = vpop.f32.mrb[0].mxu0
      %v1871 = vadd.f32 0.0, %v1870
      %1872 = vdwg.mxu0
      %v1873 = vadd.f32 %v1760, %v1869
      %v1874 = vadd.f32 %v1761, %v1871
      %s1875 = scalar_lea.vmem %s3, 28
      %v1876 = vld [vmem:[%s1875] sm:$0xf]
      %1877 = vrot.lane.b32.xlu0 %v1762, 95
      %v1878 = vpop.permute.xlu0 %1877
      %1879 = vrot.lane.b32.xlu0 %v1766, 95
      %v1880 = vpop.permute.xlu0 %1879
      %1881 = vrot.lane.b32.xlu0 %v1763, 95
      %v1882 = vpop.permute.xlu0 %1881
      %v1883 = vsel %vm983, %v1878, %v1880
      %v1884 = vsel %vm983, %v1880, %v1882
      %v1886 = vsel %vm326, %v1876, 0
      %v1888 = vsel %vm330, %v1883, 0
      %v1890 = vsel %vm330, %v1884, 0
      %1892 = vmatprep.subr.mxu0 %v1890
      %1893 = vmatpush1.msra.mxu0 %v1888
      %1894 = vmatprep.subr.mxu0 0.0
      %1895 = vmatpush1.msra.mxu0 0.0
      %1896 = vmatprep.subr.mxu0 0.0
      %1897 = vmatpush1.msra.mxu0 0.0
      %1898 = vmatprep.subr.mxu0 0.0
      %1899 = vmatpush1.msra.mxu0 0.0
      %1900 = vmatprep.subr.mxu0 0.0
      %1901 = vmatpush1.msra.mxu0 0.0
      %1902 = vmatprep.subr.mxu0 0.0
      %1903 = vmatpush1.msra.mxu0 0.0
      %1904 = vmatprep.subr.mxu0 0.0
      %1905 = vmatpush1.msra.mxu0 0.0
      %1906 = vmatprep.subr.mxu0 0.0
      %1907 = vmatpush1.msra.mxu0 0.0
      %1908 = vmatprep.subr.mxu0 0.0
      %1909 = vmatpush1.msra.mxu0 0.0
      %1910 = vmatprep.subr.mxu0 0.0
      %1911 = vmatpush1.msra.mxu0 0.0
      %1912 = vmatprep.subr.mxu0 0.0
      %1913 = vmatpush1.msra.mxu0 0.0
      %1914 = vmatprep.subr.mxu0 0.0
      %1915 = vmatpush1.msra.mxu0 0.0
      %1916 = vmatprep.subr.mxu0 0.0
      %1917 = vmatpush1.msra.mxu0 0.0
      %1918 = vmatprep.subr.mxu0 0.0
      %1919 = vmatpush1.msra.mxu0 0.0
      %1920 = vmatprep.subr.mxu0 0.0
      %1921 = vmatpush1.msra.mxu0 0.0
      %1922 = vmatprep.subr.mxu0 0.0
      %1923 = vmatpush1.msra.mxu0 0.0
      %1924 = vmatprep.subr.mxu0 0.0
      %1925 = vmatpush1.msra.mxu0 0.0
      %1926 = vmatprep.subr.mxu0 0.0
      %1927 = vmatpush1.msra.mxu0 0.0
      %1928 = vmatprep.subr.mxu0 0.0
      %1929 = vmatpush1.msra.mxu0 0.0
      %1930 = vmatprep.subr.mxu0 0.0
      %1931 = vmatpush1.msra.mxu0 0.0
      %1932 = vmatprep.subr.mxu0 0.0
      %1933 = vmatpush1.msra.mxu0 0.0
      %1934 = vmatprep.subr.mxu0 0.0
      %1935 = vmatpush1.msra.mxu0 0.0
      %1936 = vmatprep.subr.mxu0 0.0
      %1937 = vmatpush1.msra.mxu0 0.0
      %1938 = vmatprep.subr.mxu0 0.0
      %1939 = vmatpush1.msra.mxu0 0.0
      %1940 = vmatprep.subr.mxu0 0.0
      %1941 = vmatpush1.msra.mxu0 0.0
      %1942 = vmatprep.subr.mxu0 0.0
      %1943 = vmatpush1.msra.mxu0 0.0
      %1944 = vmatprep.subr.mxu0 0.0
      %1945 = vmatpush1.msra.mxu0 0.0
      %1946 = vmatprep.subr.mxu0 0.0
      %1947 = vmatpush1.msra.mxu0 0.0
      %1948 = vmatprep.subr.mxu0 0.0
      %1949 = vmatpush1.msra.mxu0 0.0
      %1950 = vmatprep.subr.mxu0 0.0
      %1951 = vmatpush1.msra.mxu0 0.0
      %1952 = vmatprep.subr.mxu0 0.0
      %1953 = vmatpush1.msra.mxu0 0.0
      %1954 = vmatprep.subr.mxu0 0.0
      %1955 = vmatpush1.msra.mxu0 0.0
      %1956 = vmatprep.mubr.f32.mxu0 0.0
      %1957 = vmatmul.mubr.f32.gmra.mrb[0].mxu0 %v1886
      %v1958 = vpop.f32.mrb[0].mxu0
      %v1959 = vadd.f32 0.0, %v1958
      %v1960 = vpop.f32.mrb[0].mxu0
      %v1961 = vadd.f32 0.0, %v1960
      %1962 = vdwg.mxu0
      %v1963 = vadd.f32 %v1873, %v1959
      %v1964 = vadd.f32 %v1874, %v1961
      %s1965 = scalar_lea.vmem %s3, 32
      %v1966 = vld [vmem:[%s1965] sm:$0xf]
      %v1968 = vsel %vm326, %v1966, 0
      %v1971 = vsel %vm330, %v1789, 0
      %v1974 = vsel %vm330, %v1790, 0
      %1976 = vmatprep.subr.mxu0 %v1974
      %1977 = vmatpush1.msra.mxu0 %v1971
      %1978 = vmatprep.subr.mxu0 0.0
      %1979 = vmatpush1.msra.mxu0 0.0
      %1980 = vmatprep.subr.mxu0 0.0
      %1981 = vmatpush1.msra.mxu0 0.0
      %1982 = vmatprep.subr.mxu0 0.0
      %1983 = vmatpush1.msra.mxu0 0.0
      %1984 = vmatprep.subr.mxu0 0.0
      %1985 = vmatpush1.msra.mxu0 0.0
      %1986 = vmatprep.subr.mxu0 0.0
      %1987 = vmatpush1.msra.mxu0 0.0
      %1988 = vmatprep.subr.mxu0 0.0
      %1989 = vmatpush1.msra.mxu0 0.0
      %1990 = vmatprep.subr.mxu0 0.0
      %1991 = vmatpush1.msra.mxu0 0.0
      %1992 = vmatprep.subr.mxu0 0.0
      %1993 = vmatpush1.msra.mxu0 0.0
      %1994 = vmatprep.subr.mxu0 0.0
      %1995 = vmatpush1.msra.mxu0 0.0
      %1996 = vmatprep.subr.mxu0 0.0
      %1997 = vmatpush1.msra.mxu0 0.0
      %1998 = vmatprep.subr.mxu0 0.0
      %1999 = vmatpush1.msra.mxu0 0.0
      %2000 = vmatprep.subr.mxu0 0.0
      %2001 = vmatpush1.msra.mxu0 0.0
      %2002 = vmatprep.subr.mxu0 0.0
      %2003 = vmatpush1.msra.mxu0 0.0
      %2004 = vmatprep.subr.mxu0 0.0
      %2005 = vmatpush1.msra.mxu0 0.0
      %2006 = vmatprep.subr.mxu0 0.0
      %2007 = vmatpush1.msra.mxu0 0.0
      %2008 = vmatprep.subr.mxu0 0.0
      %2009 = vmatpush1.msra.mxu0 0.0
      %2010 = vmatprep.subr.mxu0 0.0
      %2011 = vmatpush1.msra.mxu0 0.0
      %2012 = vmatprep.subr.mxu0 0.0
      %2013 = vmatpush1.msra.mxu0 0.0
      %2014 = vmatprep.subr.mxu0 0.0
      %2015 = vmatpush1.msra.mxu0 0.0
      %2016 = vmatprep.subr.mxu0 0.0
      %2017 = vmatpush1.msra.mxu0 0.0
      %2018 = vmatprep.subr.mxu0 0.0
      %2019 = vmatpush1.msra.mxu0 0.0
      %2020 = vmatprep.subr.mxu0 0.0
      %2021 = vmatpush1.msra.mxu0 0.0
      %2022 = vmatprep.subr.mxu0 0.0
      %2023 = vmatpush1.msra.mxu0 0.0
      %2024 = vmatprep.subr.mxu0 0.0
      %2025 = vmatpush1.msra.mxu0 0.0
      %2026 = vmatprep.subr.mxu0 0.0
      %2027 = vmatpush1.msra.mxu0 0.0
      %2028 = vmatprep.subr.mxu0 0.0
      %2029 = vmatpush1.msra.mxu0 0.0
      %2030 = vmatprep.subr.mxu0 0.0
      %2031 = vmatpush1.msra.mxu0 0.0
      %2032 = vmatprep.subr.mxu0 0.0
      %2033 = vmatpush1.msra.mxu0 0.0
      %2034 = vmatprep.subr.mxu0 0.0
      %2035 = vmatpush1.msra.mxu0 0.0
      %2036 = vmatprep.subr.mxu0 0.0
      %2037 = vmatpush1.msra.mxu0 0.0
      %2038 = vmatprep.subr.mxu0 0.0
      %2039 = vmatpush1.msra.mxu0 0.0
      %2040 = vmatprep.mubr.f32.mxu0 0.0
      %2041 = vmatmul.mubr.f32.gmra.mrb[0].mxu0 %v1968
      %v2042 = vpop.f32.mrb[0].mxu0
      %v2043 = vadd.f32 0.0, %v2042
      %v2044 = vpop.f32.mrb[0].mxu0
      %v2045 = vadd.f32 0.0, %v2044
      %2046 = vdwg.mxu0
      %v2047 = vadd.f32 %v1963, %v2043
      %v2048 = vadd.f32 %v1964, %v2045
      %v2049 = vld [vmem:[%s4] sm:$0xf]
      %2051 = vset.pattern.permute.xlu0 0
      %2052 = vperm.xlu0 %2051, %v2049
      %v2053 = vpop.permute.xlu0 %2052
      %v2055 = vadd.f32 %v2047, %v2053
      %v2056 = vadd.f32 %v2048, %v2053
      %v2057 = vsel %vm330, %v2055, 0.0
      %v2058 = vsel %vm330, %v2056, 0.0
      %v2059 = vadd.f32 %v2057, %v2058
      %2060 = vadd.xlane.f32.xlu0 %v2059
      %v2061 = vpop.xlane.xlu0 %2060
      %v2062 = vmul.f32 %v2061, 0.00390625
      %v2063 = vsub.f32 %v2055, %v2062
      %v2064 = vsub.f32 %v2056, %v2062
      %v2065 = vmul.f32 %v2063, %v2063
      %v2066 = vmul.f32 %v2064, %v2064
      %v2067 = vsel %vm330, %v2065, 0.0
      %v2068 = vsel %vm330, %v2066, 0.0
      %v2069 = vadd.f32 %v2067, %v2068
      %2070 = vadd.xlane.f32.xlu0 %v2069
      %v2071 = vpop.xlane.xlu0 %2070
      %v2072 = vmul.f32 %v2071, 0.00390625
      %v2073 = vadd.f32 %v2072, 1e-05
      %v2074 = vrsqrt.pop %v2073
      %v2075 = vmul.f32 %v2063, %v2074
      %v2076 = vmul.f32 %v2064, %v2074
      %v2079 = vcombine.low %v2075, %v2076
      %v2081 = vadd.f32 %v256, %v2079
      %2082 = vst [vmem:[%s224] sm:$0xff] %v2081
      %p2083 = scmp.lt.s32.totalorder %s16, 1
      %s2084 = scalar_select %p2083, %s16, 1
      %s2085 = smul.addr %s2084, 2
      %s2086 = smul.addr %s2085, 4
      %s2087 = scalar_lea.vmem %s5, %s2086
      // Predicated region
      $region41: #{resnet_block_forward.1} parent=39 // pred_check
        %p2088 = pneg %p144
      $region42: #{resnet_block_forward.1} parent=39 // pred_check_branch
        %2090 = sbr.rel (%p2088) target = $region44
      $region43: #{resnet_block_forward.1} parent=39 // pred_region
        _
      $region44: #{resnet_block_forward.1} parent=39 // pred_fallthru
        _
    $region40: #{resnet_block_forward.1} parent=5 // pred_fallthru
      _
    %p2091 = scmp.le.s32.totalorder 2, %s11
    // Predicated region
    $region45: #{resnet_block_forward.1} parent=5 // pred_check
      %p2092 = pneg %p2091
    $region46: #{resnet_block_forward.1} parent=5 // pred_check_branch
      %2094 = sbr.rel (%p2092) target = $region48
    $region47: #{resnet_block_forward.1} parent=5 // pred_region
      %s2095 = ssub.s32 %s11, 2
      // Predicated region
      $region49: #{resnet_block_forward.1} parent=47 // pred_check
        %p2096 = pneg %p150
      $region50: #{resnet_block_forward.1} parent=47 // pred_check_branch
        %2098 = sbr.rel (%p2096) target = $region52
      $region51: #{resnet_block_forward.1} parent=47 // pred_region
        %p2099 = scmp.lt.s32.totalorder %s17, 1
        %s2100 = scalar_select %p2099, %s17, 1
        %s2101 = smul.addr %s2100, 2
        %s2102 = smul.addr %s2101, 4
        %s2103 = scalar_lea.vmem %s5, %s2102
      $region52: #{resnet_block_forward.1} parent=47 // pred_fallthru
        _
    $region48: #{resnet_block_forward.1} parent=5 // pred_fallthru
      _
  $region6: #{resnet_block_forward.1} parent=0 // loop_footer
    %s15 = sadd.s32 1, %s11
  $region7: #{resnet_block_forward.1} parent=0 // loop_footer_branch
    %10 = sbr.rel target = $region3
  $region8: #{resnet_block_forward.1} parent=0 // loop_exit
    _

</llo_original>
